<compile_context>
chip_gen: v5e
topology: v5e:2x2
jax: 0.10.0
libtpu: 0.0.40
codegen_flags: <defaults>
</compile_context>

<pallas_src>
import functools

import jax
import jax.numpy as jnp
from jax import lax
from jax.experimental import pallas as pl
from jax.experimental.pallas import tpu as pltpu


def _silu(x):
    # x * sigmoid(x) with exp + approximate reciprocal: both on the EUP slot,
    # keeping the VPU free for the pool maxima.  x is f32.
    return x * pl.reciprocal(1.0 + jnp.exp(-x), approx=True)


def sppf_kernel(x_ref, hi_ref, wi_ref, w1_ref, b1_ref, w2_ref, b2_ref,
                o_ref, slab_ref, *, W):
    # x_ref: (C1, L) mxu dtype; hi/wi: (1, L) f32 per-image coordinate maps;
    # w1: (C_, C1), w2: (C2, 4*C_) mxu dtype; b1: (C_,1), b2: (C2,1) f32;
    # o_ref: (C2, L) f32; slab_ref: (4*C_, L) f32 VMEM scratch.
    x = x_ref[...]
    L = x.shape[1]
    C_ = w1_ref.shape[0]
    h_idx = hi_ref[...]
    w_idx = wi_ref[...]
    NEG = jnp.float32(-1e30)

    # cv1: 1x1 conv (+ folded BN) as a single lane-dense MXU matmul, then SiLU.
    h = jnp.dot(w1_ref[...], x, preferred_element_type=jnp.float32) + b1_ref[...]
    h = _silu(h)                                   # (C_, L) f32

    # --- separable 5x5 / stride-1 / pad-2 max pool via lane rolls -------------
    # (W pass then H pass: 8 maxima per pool, not 24.)  A lane roll by s pairs
    # each position p with some source q; rolling the coordinate maps by the
    # SAME s identifies that source, so the edge penalties are correct whatever
    # the roll-direction convention, and positions belonging to different images
    # in the folded lane axis never mix (|dh| at image seams is H-1 > 2).
    # Assumes H, W >= 5 (true for any real SPPF feature map).
    w_shifts = (1, 2, L - 1, L - 2)                # +/-1, +/-2 along W (mod L)
    h_shifts = (W, 2 * W, L - W, L - 2 * W)        # +/-1, +/-2 along H (mod L)

    def penalty(s, dh_max, dw_max):
        hs = pltpu.roll(h_idx, s, axis=1)
        ws = pltpu.roll(w_idx, s, axis=1)
        ok = (jnp.abs(hs - h_idx) <= dh_max) & (jnp.abs(ws - w_idx) <= dw_max)
        pen = jnp.where(ok, jnp.float32(0.0), NEG)           # (1, L)
        # Hoist the sublane broadcast once per penalty row (JAX does not CSE
        # broadcast_in_dim; otherwise every tap re-lowers it).  Cheap at the
        # tested C_=2; skip the materialization at production C_.
        return jnp.broadcast_to(pen, (C_, L))

    # Built once per kernel call and reused by all three pools.
    w_pen = [penalty(s, 0, 2) for s in w_shifts]   # same row, |dw| <= 2
    h_pen = [penalty(s, 2, 0) for s in h_shifts]   # same col, |dh| <= 2

    def maxpool5(z):
        # Additive -1e30 sentinel is safe: z is post-SiLU, bounded below ~-0.279.
        r = z                                      # center tap (counted once)
        for s, p in zip(w_shifts, w_pen):          # 4 maxima along W
            r = jnp.maximum(r, pltpu.roll(z, s, axis=1) + p)
        out = r
        for s, p in zip(h_shifts, h_pen):          # 4 maxima along H
            out = jnp.maximum(out, pltpu.roll(r, s, axis=1) + p)
        return out

    # Stack [h; y1; y2; y3] into the VMEM slab scratch, then cv2 as ONE fused
    # (C2, 4*C_) x (4*C_, L) MXU matmul (amortizes weight-push / fill / pop that
    # four K=C_ matmuls each paid in full).
    slab_ref[0:C_, :] = h
    y = h
    for i in range(1, 4):
        y = maxpool5(y)
        slab_ref[i * C_:(i + 1) * C_, :] = y

    acc = jnp.dot(w2_ref[...], slab_ref[...].astype(w2_ref.dtype),
                  preferred_element_type=jnp.float32)
    o_ref[...] = _silu(acc + b2_ref[...]).astype(o_ref.dtype)


def sppf_forward(x_nchw, w1, b1, w2, b2, *, mxu_dtype=jnp.bfloat16, num_blocks=1):
    """SPPF forward.

    x_nchw: (N, C1, H, W) f32.  w1: (C_, C1), b1: (C_, 1), w2: (C2, 4*C_),
    b2: (C2, 1) with eval-mode BatchNorm already folded in.
    mxu_dtype: dtype of the MXU matmul operands (bf16 recommended on
      v5e/v6e/v7x; pool/SiLU math stays f32).
    num_blocks: lane-axis grid blocks (whole images per block).  1 folds the
      whole batch into a single lane-dense step (best for 1-TC v5e/v6e at these
      sizes); 2 gives both v7x TensorCores work.
    """
    N, C1, H, W = x_nchw.shape
    C_ = w1.shape[0]
    C2 = w2.shape[0]
    HW = H * W
    assert H >= 5 and W >= 5, "separable-pool edge masking assumes H, W >= 5"
    assert N % num_blocks == 0
    ipb = N // num_blocks           # images per grid block
    L = N * HW                      # folded lane axis
    Lb = ipb * HW                   # lanes per block

    # Fold the batch into the lane axis: (N, C1, H, W) -> (C1, N*HW).  One XLA
    # transpose outside the kernel; it widens the MXU N-dim to N*HW, keeps the
    # store unmasked/lane-dense and removes per-image grid-step overhead.
    x2d = jnp.transpose(x_nchw, (1, 0, 2, 3)).reshape(C1, L).astype(mxu_dtype)
    w1c = w1.astype(mxu_dtype)
    w2c = w2.astype(mxu_dtype)

    # Per-block (row, col) coordinate maps (identical for every block since a
    # block always holds whole images); used in-kernel for the pool edge masks.
    hh, ww = jnp.meshgrid(jnp.arange(H, dtype=jnp.float32),
                          jnp.arange(W, dtype=jnp.float32), indexing="ij")
    h_idx = jnp.tile(hh.reshape(1, HW), (1, ipb))
    w_idx = jnp.tile(ww.reshape(1, HW), (1, ipb))

    flops = 2 * L * (C1 * C_ + 4 * C_ * C2) + 3 * 8 * C_ * L
    transcendentals = L * (C_ + C2)
    bytes_accessed = (x2d.size * x2d.dtype.itemsize + 4 * C2 * L + 4 * 2 * Lb
                      + w1c.size * w1c.dtype.itemsize
                      + w2c.size * w2c.dtype.itemsize + 4 * (C_ + C2))

    out = pl.pallas_call(
        functools.partial(sppf_kernel, W=W),
        out_shape=jax.ShapeDtypeStruct((C2, L), jnp.float32),
        grid=(num_blocks,),
        in_specs=[
            pl.BlockSpec((C1, Lb), lambda b: (0, b)),
            pl.BlockSpec((1, Lb), lambda b: (0, 0)),
            pl.BlockSpec((1, Lb), lambda b: (0, 0)),
            pl.BlockSpec((C_, C1), lambda b: (0, 0)),
            pl.BlockSpec((C_, 1), lambda b: (0, 0)),
            pl.BlockSpec((C2, 4 * C_), lambda b: (0, 0)),
            pl.BlockSpec((C2, 1), lambda b: (0, 0)),
        ],
        out_specs=pl.BlockSpec((C2, Lb), lambda b: (0, b)),
        scratch_shapes=[pltpu.VMEM((4 * C_, Lb), jnp.float32)],
        compiler_params=pltpu.CompilerParams(dimension_semantics=("parallel",)),
        cost_estimate=pl.CostEstimate(
            flops=int(flops),
            transcendentals=int(transcendentals),
            bytes_accessed=int(bytes_accessed),
        ),
    )(x2d, h_idx, w_idx, w1c, b1, w2c, b2)

    # (C2, N*HW) -> (N, C2, H, W)
    return jnp.transpose(out.reshape(C2, N, H, W), (1, 0, 2, 3))


def make_params(key, c1, c2):
    """Deterministically build Conv+BN parameters and fold BN (eval mode) into W/b."""
    c_ = c1 // 2
    eps = 1e-5
    ks = jax.random.split(key, 8)

    def fold(conv_w, gamma, beta, mean, var):
        scale = gamma / jnp.sqrt(var + eps)
        w = conv_w * scale[:, None]
        b = (beta - mean * scale)[:, None]
        return w.astype(jnp.float32), b.astype(jnp.float32)

    # cv1: c1 -> c_
    cw1 = jax.random.normal(ks[0], (c_, c1), jnp.float32) * 0.2
    g1 = 1.0 + 0.1 * jax.random.normal(ks[1], (c_,), jnp.float32)
    be1 = 0.1 * jax.random.normal(ks[2], (c_,), jnp.float32)
    m1 = 0.1 * jax.random.normal(ks[3], (c_,), jnp.float32)
    v1 = jnp.abs(jax.random.normal(ks[4], (c_,), jnp.float32)) * 0.5 + 0.5
    w1, b1 = fold(cw1, g1, be1, m1, v1)

    # cv2: 4*c_ -> c2.  Input-channel order matches cat([h, y1, y2, y3]).
    cw2 = jax.random.normal(ks[5], (c2, 4 * c_), jnp.float32) * 0.2
    g2 = 1.0 + 0.1 * jax.random.normal(ks[6], (c2,), jnp.float32)
    be2 = 0.1 * jax.random.normal(ks[7], (c2,), jnp.float32)
    m2 = jnp.zeros((c2,), jnp.float32)
    v2 = jnp.ones((c2,), jnp.float32)
    w2, b2 = fold(cw2, g2, be2, m2, v2)

    return w1, b1, w2, b2


def sppf_reference(x, w1, b1, w2, b2, *, mxu_dtype=None):
    """Pure-JAX NCHW reference (structurally different from the kernel).

    If mxu_dtype is given, conv operands are quantized at the same points as the
    kernel's MXU matmuls (accumulation stays f32), so the kernel's structure
    (layout fold, pools, masks, fused cv2) can be checked tightly in bf16 mode.
    """
    hi = lax.Precision.HIGHEST

    def q(a):
        return a if mxu_dtype is None else a.astype(mxu_dtype)

    h = jnp.einsum("dc,nchw->ndhw", q(w1), q(x),
                   preferred_element_type=jnp.float32, precision=hi)
    h = h + b1.reshape(1, -1, 1, 1)
    h = h * jax.nn.sigmoid(h)

    def pool(z):
        return lax.reduce_window(z, -jnp.inf, lax.max,
                                 (1, 1, 5, 5), (1, 1, 1, 1), "SAME")

    ys = [h]
    for _ in range(3):
        ys.append(pool(ys[-1]))
    cat = jnp.concatenate(ys, axis=1)
    out = jnp.einsum("dc,nchw->ndhw", q(w2), q(cat),
                     preferred_element_type=jnp.float32, precision=hi)
    out = out + b2.reshape(1, -1, 1, 1)
    return out * jax.nn.sigmoid(out)


if __name__ == "__main__":
    N, C1, H, W = 2, 4, 16, 16
    C2 = 8

    key = jax.random.PRNGKey(0)
    kx, kp = jax.random.split(key)
    x = jax.random.normal(kx, (N, C1, H, W), jnp.float32)
    w1, b1, w2, b2 = make_params(kp, C1, C2)

    # Production config: bf16 MXU operands, whole batch in one lane-dense step.
    run_bf16 = jax.jit(functools.partial(
        sppf_forward, mxu_dtype=jnp.bfloat16, num_blocks=1))
    out_bf16 = jax.block_until_ready(run_bf16(x, w1, b1, w2, b2))
    assert out_bf16.shape == (N, C2, H, W)

    # f32-MXU config with a 2-way whole-image lane-block grid (v7x 2-TC path).
    run_f32 = jax.jit(functools.partial(
        sppf_forward, mxu_dtype=jnp.float32, num_blocks=2))
    out_f32 = jax.block_until_ready(run_f32(x, w1, b1, w2, b2))

    ref_f32 = sppf_reference(x, w1, b1, w2, b2, mxu_dtype=None)
    ref_bf16 = sppf_reference(x, w1, b1, w2, b2, mxu_dtype=jnp.bfloat16)

    # Structural checks vs references quantized at the same MXU operand
    # boundaries (remaining delta = approx-reciprocal SiLU + accumulation order).
    assert jnp.allclose(out_f32, ref_f32, atol=2e-2, rtol=2e-2)
    assert jnp.allclose(out_bf16, ref_bf16, atol=2e-2, rtol=2e-2)
    # bf16 quantization vs the exact-f32 module output stays small (by design).
    assert jnp.allclose(out_bf16, ref_f32, atol=1e-1, rtol=1e-1)

    print("KERNEL_OK")
</pallas_src>

<mosaic_0001>
module attributes {stable_mosaic.version = 11 : i64} {
  func.func @sppf_kernel(%arg0: i32, %arg1: memref<4x512xbf16, #tpu.memory_space<vmem>>, %arg2: memref<1x512xf32, #tpu.memory_space<vmem>>, %arg3: memref<1x512xf32, #tpu.memory_space<vmem>>, %arg4: memref<2x4xbf16, #tpu.memory_space<vmem>>, %arg5: memref<2x1xf32, #tpu.memory_space<vmem>>, %arg6: memref<8x8xbf16, #tpu.memory_space<vmem>>, %arg7: memref<8x1xf32, #tpu.memory_space<vmem>>, %arg8: memref<8x512xf32, #tpu.memory_space<vmem>>, %arg9: memref<8x512xf32, #tpu.memory_space<vmem>>) attributes {dimension_semantics = [#tpu.dimension_semantics<parallel>], iteration_bounds = array<i64: 1>, scalar_prefetch = 0 : i64, scratch_operands = 1 : i64, tpu.core_type = #tpu.core_type<tc>, window_params = [{transform_indices = @transform_0, window_bounds = array<i64: 4, 512>}, {pipeline_mode = #tpu.pipeline_mode<synchronous>, transform_indices = @transform_1, window_bounds = array<i64: 1, 512>}, {pipeline_mode = #tpu.pipeline_mode<synchronous>, transform_indices = @transform_2, window_bounds = array<i64: 1, 512>}, {pipeline_mode = #tpu.pipeline_mode<synchronous>, transform_indices = @transform_3, window_bounds = array<i64: 2, 4>}, {pipeline_mode = #tpu.pipeline_mode<synchronous>, transform_indices = @transform_4, window_bounds = array<i64: 2, 1>}, {pipeline_mode = #tpu.pipeline_mode<synchronous>, transform_indices = @transform_5, window_bounds = array<i64: 8, 8>}, {pipeline_mode = #tpu.pipeline_mode<synchronous>, transform_indices = @transform_6, window_bounds = array<i64: 8, 1>}, {transform_indices = @transform_7, window_bounds = array<i64: 8, 512>}]} {
    %c0 = arith.constant 0 : index
    %c0_0 = arith.constant 0 : index
    %0 = vector.load %arg1[%c0, %c0_0] : memref<4x512xbf16, #tpu.memory_space<vmem>>, vector<4x512xbf16>
    %c0_1 = arith.constant 0 : index
    %c0_2 = arith.constant 0 : index
    %1 = vector.load %arg2[%c0_1, %c0_2] : memref<1x512xf32, #tpu.memory_space<vmem>>, vector<1x512xf32>
    %c0_3 = arith.constant 0 : index
    %c0_4 = arith.constant 0 : index
    %2 = vector.load %arg3[%c0_3, %c0_4] : memref<1x512xf32, #tpu.memory_space<vmem>>, vector<1x512xf32>
    %c0_5 = arith.constant 0 : index
    %c0_6 = arith.constant 0 : index
    %3 = vector.load %arg4[%c0_5, %c0_6] : memref<2x4xbf16, #tpu.memory_space<vmem>>, vector<2x4xbf16>
    %cst = arith.constant dense<0.000000e+00> : vector<2x512xf32>
    %4 = tpu.matmul %3, %0, %cst {dimension_numbers = #tpu.dot_dimension_numbers<[1], [0], [0], [1], [0, 0, 1, 1], [], []>} : vector<2x4xbf16>, vector<4x512xbf16>, vector<2x512xf32> -> vector<2x512xf32>
    %c0_7 = arith.constant 0 : index
    %c0_8 = arith.constant 0 : index
    %5 = vector.load %arg5[%c0_7, %c0_8] : memref<2x1xf32, #tpu.memory_space<vmem>>, vector<2x1xf32>
    %6 = vector.broadcast %5 : vector<2x1xf32> to vector<2x512xf32>
    %7 = arith.addf %4, %6 : vector<2x512xf32>
    %cst_9 = arith.constant 0.000000e+00 : f32
    %8 = vector.broadcast %cst_9 : f32 to vector<2x512xf32>
    %9 = arith.subf %8, %7 : vector<2x512xf32>
    %10 = math.exp %9 : vector<2x512xf32>
    %cst_10 = arith.constant 1.000000e+00 : f32
    %11 = vector.broadcast %cst_10 : f32 to vector<2x512xf32>
    %12 = arith.addf %11, %10 : vector<2x512xf32>
    %13 = tpu.reciprocal %12 {approx = true} : vector<2x512xf32> -> vector<2x512xf32>
    %14 = arith.mulf %7, %13 : vector<2x512xf32>
    %c1_i32 = arith.constant 1 : i32
    %15 = tpu.dynamic_rotate %1 by %c1_i32 dim 1 : vector<1x512xf32>, i32 -> vector<1x512xf32>
    %c1_i32_11 = arith.constant 1 : i32
    %16 = tpu.dynamic_rotate %2 by %c1_i32_11 dim 1 : vector<1x512xf32>, i32 -> vector<1x512xf32>
    %17 = arith.subf %15, %1 : vector<1x512xf32>
    %18 = math.absf %17 : vector<1x512xf32>
    %cst_12 = arith.constant 0.000000e+00 : f32
    %19 = vector.broadcast %cst_12 : f32 to vector<1x512xf32>
    %20 = arith.cmpf ole, %18, %19 : vector<1x512xf32>
    %21 = arith.subf %16, %2 : vector<1x512xf32>
    %22 = math.absf %21 : vector<1x512xf32>
    %cst_13 = arith.constant 2.000000e+00 : f32
    %23 = vector.broadcast %cst_13 : f32 to vector<1x512xf32>
    %24 = arith.cmpf ole, %22, %23 : vector<1x512xf32>
    %25 = arith.andi %20, %24 : vector<1x512xi1>
    %cst_14 = arith.constant 0.000000e+00 : f32
    %cst_15 = arith.constant -1.000000e+30 : f32
    %26 = vector.broadcast %cst_14 : f32 to vector<1x512xf32>
    %27 = vector.broadcast %cst_15 : f32 to vector<1x512xf32>
    %28 = arith.select %25, %26, %27 : vector<1x512xi1>, vector<1x512xf32>
    %29 = vector.shape_cast %28 : vector<1x512xf32> to vector<1x512xf32>
    %30 = vector.broadcast %29 : vector<1x512xf32> to vector<2x512xf32>
    %c2_i32 = arith.constant 2 : i32
    %31 = tpu.dynamic_rotate %1 by %c2_i32 dim 1 : vector<1x512xf32>, i32 -> vector<1x512xf32>
    %c2_i32_16 = arith.constant 2 : i32
    %32 = tpu.dynamic_rotate %2 by %c2_i32_16 dim 1 : vector<1x512xf32>, i32 -> vector<1x512xf32>
    %33 = arith.subf %31, %1 : vector<1x512xf32>
    %34 = math.absf %33 : vector<1x512xf32>
    %cst_17 = arith.constant 0.000000e+00 : f32
    %35 = vector.broadcast %cst_17 : f32 to vector<1x512xf32>
    %36 = arith.cmpf ole, %34, %35 : vector<1x512xf32>
    %37 = arith.subf %32, %2 : vector<1x512xf32>
    %38 = math.absf %37 : vector<1x512xf32>
    %cst_18 = arith.constant 2.000000e+00 : f32
    %39 = vector.broadcast %cst_18 : f32 to vector<1x512xf32>
    %40 = arith.cmpf ole, %38, %39 : vector<1x512xf32>
    %41 = arith.andi %36, %40 : vector<1x512xi1>
    %cst_19 = arith.constant 0.000000e+00 : f32
    %cst_20 = arith.constant -1.000000e+30 : f32
    %42 = vector.broadcast %cst_19 : f32 to vector<1x512xf32>
    %43 = vector.broadcast %cst_20 : f32 to vector<1x512xf32>
    %44 = arith.select %41, %42, %43 : vector<1x512xi1>, vector<1x512xf32>
    %45 = vector.shape_cast %44 : vector<1x512xf32> to vector<1x512xf32>
    %46 = vector.broadcast %45 : vector<1x512xf32> to vector<2x512xf32>
    %c511_i32 = arith.constant 511 : i32
    %47 = tpu.dynamic_rotate %1 by %c511_i32 dim 1 : vector<1x512xf32>, i32 -> vector<1x512xf32>
    %c511_i32_21 = arith.constant 511 : i32
    %48 = tpu.dynamic_rotate %2 by %c511_i32_21 dim 1 : vector<1x512xf32>, i32 -> vector<1x512xf32>
    %49 = arith.subf %47, %1 : vector<1x512xf32>
    %50 = math.absf %49 : vector<1x512xf32>
    %cst_22 = arith.constant 0.000000e+00 : f32
    %51 = vector.broadcast %cst_22 : f32 to vector<1x512xf32>
    %52 = arith.cmpf ole, %50, %51 : vector<1x512xf32>
    %53 = arith.subf %48, %2 : vector<1x512xf32>
    %54 = math.absf %53 : vector<1x512xf32>
    %cst_23 = arith.constant 2.000000e+00 : f32
    %55 = vector.broadcast %cst_23 : f32 to vector<1x512xf32>
    %56 = arith.cmpf ole, %54, %55 : vector<1x512xf32>
    %57 = arith.andi %52, %56 : vector<1x512xi1>
    %cst_24 = arith.constant 0.000000e+00 : f32
    %cst_25 = arith.constant -1.000000e+30 : f32
    %58 = vector.broadcast %cst_24 : f32 to vector<1x512xf32>
    %59 = vector.broadcast %cst_25 : f32 to vector<1x512xf32>
    %60 = arith.select %57, %58, %59 : vector<1x512xi1>, vector<1x512xf32>
    %61 = vector.shape_cast %60 : vector<1x512xf32> to vector<1x512xf32>
    %62 = vector.broadcast %61 : vector<1x512xf32> to vector<2x512xf32>
    %c510_i32 = arith.constant 510 : i32
    %63 = tpu.dynamic_rotate %1 by %c510_i32 dim 1 : vector<1x512xf32>, i32 -> vector<1x512xf32>
    %c510_i32_26 = arith.constant 510 : i32
    %64 = tpu.dynamic_rotate %2 by %c510_i32_26 dim 1 : vector<1x512xf32>, i32 -> vector<1x512xf32>
    %65 = arith.subf %63, %1 : vector<1x512xf32>
    %66 = math.absf %65 : vector<1x512xf32>
    %cst_27 = arith.constant 0.000000e+00 : f32
    %67 = vector.broadcast %cst_27 : f32 to vector<1x512xf32>
    %68 = arith.cmpf ole, %66, %67 : vector<1x512xf32>
    %69 = arith.subf %64, %2 : vector<1x512xf32>
    %70 = math.absf %69 : vector<1x512xf32>
    %cst_28 = arith.constant 2.000000e+00 : f32
    %71 = vector.broadcast %cst_28 : f32 to vector<1x512xf32>
    %72 = arith.cmpf ole, %70, %71 : vector<1x512xf32>
    %73 = arith.andi %68, %72 : vector<1x512xi1>
    %cst_29 = arith.constant 0.000000e+00 : f32
    %cst_30 = arith.constant -1.000000e+30 : f32
    %74 = vector.broadcast %cst_29 : f32 to vector<1x512xf32>
    %75 = vector.broadcast %cst_30 : f32 to vector<1x512xf32>
    %76 = arith.select %73, %74, %75 : vector<1x512xi1>, vector<1x512xf32>
    %77 = vector.shape_cast %76 : vector<1x512xf32> to vector<1x512xf32>
    %78 = vector.broadcast %77 : vector<1x512xf32> to vector<2x512xf32>
    %c16_i32 = arith.constant 16 : i32
    %79 = tpu.dynamic_rotate %1 by %c16_i32 dim 1 : vector<1x512xf32>, i32 -> vector<1x512xf32>
    %c16_i32_31 = arith.constant 16 : i32
    %80 = tpu.dynamic_rotate %2 by %c16_i32_31 dim 1 : vector<1x512xf32>, i32 -> vector<1x512xf32>
    %81 = arith.subf %79, %1 : vector<1x512xf32>
    %82 = math.absf %81 : vector<1x512xf32>
    %cst_32 = arith.constant 2.000000e+00 : f32
    %83 = vector.broadcast %cst_32 : f32 to vector<1x512xf32>
    %84 = arith.cmpf ole, %82, %83 : vector<1x512xf32>
    %85 = arith.subf %80, %2 : vector<1x512xf32>
    %86 = math.absf %85 : vector<1x512xf32>
    %cst_33 = arith.constant 0.000000e+00 : f32
    %87 = vector.broadcast %cst_33 : f32 to vector<1x512xf32>
    %88 = arith.cmpf ole, %86, %87 : vector<1x512xf32>
    %89 = arith.andi %84, %88 : vector<1x512xi1>
    %cst_34 = arith.constant 0.000000e+00 : f32
    %cst_35 = arith.constant -1.000000e+30 : f32
    %90 = vector.broadcast %cst_34 : f32 to vector<1x512xf32>
    %91 = vector.broadcast %cst_35 : f32 to vector<1x512xf32>
    %92 = arith.select %89, %90, %91 : vector<1x512xi1>, vector<1x512xf32>
    %93 = vector.shape_cast %92 : vector<1x512xf32> to vector<1x512xf32>
    %94 = vector.broadcast %93 : vector<1x512xf32> to vector<2x512xf32>
    %c32_i32 = arith.constant 32 : i32
    %95 = tpu.dynamic_rotate %1 by %c32_i32 dim 1 : vector<1x512xf32>, i32 -> vector<1x512xf32>
    %c32_i32_36 = arith.constant 32 : i32
    %96 = tpu.dynamic_rotate %2 by %c32_i32_36 dim 1 : vector<1x512xf32>, i32 -> vector<1x512xf32>
    %97 = arith.subf %95, %1 : vector<1x512xf32>
    %98 = math.absf %97 : vector<1x512xf32>
    %cst_37 = arith.constant 2.000000e+00 : f32
    %99 = vector.broadcast %cst_37 : f32 to vector<1x512xf32>
    %100 = arith.cmpf ole, %98, %99 : vector<1x512xf32>
    %101 = arith.subf %96, %2 : vector<1x512xf32>
    %102 = math.absf %101 : vector<1x512xf32>
    %cst_38 = arith.constant 0.000000e+00 : f32
    %103 = vector.broadcast %cst_38 : f32 to vector<1x512xf32>
    %104 = arith.cmpf ole, %102, %103 : vector<1x512xf32>
    %105 = arith.andi %100, %104 : vector<1x512xi1>
    %cst_39 = arith.constant 0.000000e+00 : f32
    %cst_40 = arith.constant -1.000000e+30 : f32
    %106 = vector.broadcast %cst_39 : f32 to vector<1x512xf32>
    %107 = vector.broadcast %cst_40 : f32 to vector<1x512xf32>
    %108 = arith.select %105, %106, %107 : vector<1x512xi1>, vector<1x512xf32>
    %109 = vector.shape_cast %108 : vector<1x512xf32> to vector<1x512xf32>
    %110 = vector.broadcast %109 : vector<1x512xf32> to vector<2x512xf32>
    %c496_i32 = arith.constant 496 : i32
    %111 = tpu.dynamic_rotate %1 by %c496_i32 dim 1 : vector<1x512xf32>, i32 -> vector<1x512xf32>
    %c496_i32_41 = arith.constant 496 : i32
    %112 = tpu.dynamic_rotate %2 by %c496_i32_41 dim 1 : vector<1x512xf32>, i32 -> vector<1x512xf32>
    %113 = arith.subf %111, %1 : vector<1x512xf32>
    %114 = math.absf %113 : vector<1x512xf32>
    %cst_42 = arith.constant 2.000000e+00 : f32
    %115 = vector.broadcast %cst_42 : f32 to vector<1x512xf32>
    %116 = arith.cmpf ole, %114, %115 : vector<1x512xf32>
    %117 = arith.subf %112, %2 : vector<1x512xf32>
    %118 = math.absf %117 : vector<1x512xf32>
    %cst_43 = arith.constant 0.000000e+00 : f32
    %119 = vector.broadcast %cst_43 : f32 to vector<1x512xf32>
    %120 = arith.cmpf ole, %118, %119 : vector<1x512xf32>
    %121 = arith.andi %116, %120 : vector<1x512xi1>
    %cst_44 = arith.constant 0.000000e+00 : f32
    %cst_45 = arith.constant -1.000000e+30 : f32
    %122 = vector.broadcast %cst_44 : f32 to vector<1x512xf32>
    %123 = vector.broadcast %cst_45 : f32 to vector<1x512xf32>
    %124 = arith.select %121, %122, %123 : vector<1x512xi1>, vector<1x512xf32>
    %125 = vector.shape_cast %124 : vector<1x512xf32> to vector<1x512xf32>
    %126 = vector.broadcast %125 : vector<1x512xf32> to vector<2x512xf32>
    %c480_i32 = arith.constant 480 : i32
    %127 = tpu.dynamic_rotate %1 by %c480_i32 dim 1 : vector<1x512xf32>, i32 -> vector<1x512xf32>
    %c480_i32_46 = arith.constant 480 : i32
    %128 = tpu.dynamic_rotate %2 by %c480_i32_46 dim 1 : vector<1x512xf32>, i32 -> vector<1x512xf32>
    %129 = arith.subf %127, %1 : vector<1x512xf32>
    %130 = math.absf %129 : vector<1x512xf32>
    %cst_47 = arith.constant 2.000000e+00 : f32
    %131 = vector.broadcast %cst_47 : f32 to vector<1x512xf32>
    %132 = arith.cmpf ole, %130, %131 : vector<1x512xf32>
    %133 = arith.subf %128, %2 : vector<1x512xf32>
    %134 = math.absf %133 : vector<1x512xf32>
    %cst_48 = arith.constant 0.000000e+00 : f32
    %135 = vector.broadcast %cst_48 : f32 to vector<1x512xf32>
    %136 = arith.cmpf ole, %134, %135 : vector<1x512xf32>
    %137 = arith.andi %132, %136 : vector<1x512xi1>
    %cst_49 = arith.constant 0.000000e+00 : f32
    %cst_50 = arith.constant -1.000000e+30 : f32
    %138 = vector.broadcast %cst_49 : f32 to vector<1x512xf32>
    %139 = vector.broadcast %cst_50 : f32 to vector<1x512xf32>
    %140 = arith.select %137, %138, %139 : vector<1x512xi1>, vector<1x512xf32>
    %141 = vector.shape_cast %140 : vector<1x512xf32> to vector<1x512xf32>
    %142 = vector.broadcast %141 : vector<1x512xf32> to vector<2x512xf32>
    %c0_51 = arith.constant 0 : index
    %c0_52 = arith.constant 0 : index
    %143 = vector.load %arg9[%c0_51, %c0_52] : memref<8x512xf32, #tpu.memory_space<vmem>>, vector<2x512xf32>
    tpu.vector_store %arg9[%c0_51, %c0_52], %14 {strides = array<i32>} : memref<8x512xf32, #tpu.memory_space<vmem>>, vector<2x512xf32>,
    %c1_i32_53 = arith.constant 1 : i32
    %144 = tpu.dynamic_rotate %14 by %c1_i32_53 dim 1 : vector<2x512xf32>, i32 -> vector<2x512xf32>
    %145 = arith.addf %144, %30 : vector<2x512xf32>
    %146 = arith.maximumf %14, %145 : vector<2x512xf32>
    %c2_i32_54 = arith.constant 2 : i32
    %147 = tpu.dynamic_rotate %14 by %c2_i32_54 dim 1 : vector<2x512xf32>, i32 -> vector<2x512xf32>
    %148 = arith.addf %147, %46 : vector<2x512xf32>
    %149 = arith.maximumf %146, %148 : vector<2x512xf32>
    %c511_i32_55 = arith.constant 511 : i32
    %150 = tpu.dynamic_rotate %14 by %c511_i32_55 dim 1 : vector<2x512xf32>, i32 -> vector<2x512xf32>
    %151 = arith.addf %150, %62 : vector<2x512xf32>
    %152 = arith.maximumf %149, %151 : vector<2x512xf32>
    %c510_i32_56 = arith.constant 510 : i32
    %153 = tpu.dynamic_rotate %14 by %c510_i32_56 dim 1 : vector<2x512xf32>, i32 -> vector<2x512xf32>
    %154 = arith.addf %153, %78 : vector<2x512xf32>
    %155 = arith.maximumf %152, %154 : vector<2x512xf32>
    %c16_i32_57 = arith.constant 16 : i32
    %156 = tpu.dynamic_rotate %155 by %c16_i32_57 dim 1 : vector<2x512xf32>, i32 -> vector<2x512xf32>
    %157 = arith.addf %156, %94 : vector<2x512xf32>
    %158 = arith.maximumf %155, %157 : vector<2x512xf32>
    %c32_i32_58 = arith.constant 32 : i32
    %159 = tpu.dynamic_rotate %155 by %c32_i32_58 dim 1 : vector<2x512xf32>, i32 -> vector<2x512xf32>
    %160 = arith.addf %159, %110 : vector<2x512xf32>
    %161 = arith.maximumf %158, %160 : vector<2x512xf32>
    %c496_i32_59 = arith.constant 496 : i32
    %162 = tpu.dynamic_rotate %155 by %c496_i32_59 dim 1 : vector<2x512xf32>, i32 -> vector<2x512xf32>
    %163 = arith.addf %162, %126 : vector<2x512xf32>
    %164 = arith.maximumf %161, %163 : vector<2x512xf32>
    %c480_i32_60 = arith.constant 480 : i32
    %165 = tpu.dynamic_rotate %155 by %c480_i32_60 dim 1 : vector<2x512xf32>, i32 -> vector<2x512xf32>
    %166 = arith.addf %165, %142 : vector<2x512xf32>
    %167 = arith.maximumf %164, %166 : vector<2x512xf32>
    %c2 = arith.constant 2 : index
    %c0_61 = arith.constant 0 : index
    %168 = vector.load %arg9[%c2, %c0_61] : memref<8x512xf32, #tpu.memory_space<vmem>>, vector<2x512xf32>
    tpu.vector_store %arg9[%c2, %c0_61], %167 {strides = array<i32>} : memref<8x512xf32, #tpu.memory_space<vmem>>, vector<2x512xf32>,
    %c1_i32_62 = arith.constant 1 : i32
    %169 = tpu.dynamic_rotate %167 by %c1_i32_62 dim 1 : vector<2x512xf32>, i32 -> vector<2x512xf32>
    %170 = arith.addf %169, %30 : vector<2x512xf32>
    %171 = arith.maximumf %167, %170 : vector<2x512xf32>
    %c2_i32_63 = arith.constant 2 : i32
    %172 = tpu.dynamic_rotate %167 by %c2_i32_63 dim 1 : vector<2x512xf32>, i32 -> vector<2x512xf32>
    %173 = arith.addf %172, %46 : vector<2x512xf32>
    %174 = arith.maximumf %171, %173 : vector<2x512xf32>
    %c511_i32_64 = arith.constant 511 : i32
    %175 = tpu.dynamic_rotate %167 by %c511_i32_64 dim 1 : vector<2x512xf32>, i32 -> vector<2x512xf32>
    %176 = arith.addf %175, %62 : vector<2x512xf32>
    %177 = arith.maximumf %174, %176 : vector<2x512xf32>
    %c510_i32_65 = arith.constant 510 : i32
    %178 = tpu.dynamic_rotate %167 by %c510_i32_65 dim 1 : vector<2x512xf32>, i32 -> vector<2x512xf32>
    %179 = arith.addf %178, %78 : vector<2x512xf32>
    %180 = arith.maximumf %177, %179 : vector<2x512xf32>
    %c16_i32_66 = arith.constant 16 : i32
    %181 = tpu.dynamic_rotate %180 by %c16_i32_66 dim 1 : vector<2x512xf32>, i32 -> vector<2x512xf32>
    %182 = arith.addf %181, %94 : vector<2x512xf32>
    %183 = arith.maximumf %180, %182 : vector<2x512xf32>
    %c32_i32_67 = arith.constant 32 : i32
    %184 = tpu.dynamic_rotate %180 by %c32_i32_67 dim 1 : vector<2x512xf32>, i32 -> vector<2x512xf32>
    %185 = arith.addf %184, %110 : vector<2x512xf32>
    %186 = arith.maximumf %183, %185 : vector<2x512xf32>
    %c496_i32_68 = arith.constant 496 : i32
    %187 = tpu.dynamic_rotate %180 by %c496_i32_68 dim 1 : vector<2x512xf32>, i32 -> vector<2x512xf32>
    %188 = arith.addf %187, %126 : vector<2x512xf32>
    %189 = arith.maximumf %186, %188 : vector<2x512xf32>
    %c480_i32_69 = arith.constant 480 : i32
    %190 = tpu.dynamic_rotate %180 by %c480_i32_69 dim 1 : vector<2x512xf32>, i32 -> vector<2x512xf32>
    %191 = arith.addf %190, %142 : vector<2x512xf32>
    %192 = arith.maximumf %189, %191 : vector<2x512xf32>
    %c4 = arith.constant 4 : index
    %c0_70 = arith.constant 0 : index
    %193 = vector.load %arg9[%c4, %c0_70] : memref<8x512xf32, #tpu.memory_space<vmem>>, vector<2x512xf32>
    tpu.vector_store %arg9[%c4, %c0_70], %192 {strides = array<i32>} : memref<8x512xf32, #tpu.memory_space<vmem>>, vector<2x512xf32>,
    %c1_i32_71 = arith.constant 1 : i32
    %194 = tpu.dynamic_rotate %192 by %c1_i32_71 dim 1 : vector<2x512xf32>, i32 -> vector<2x512xf32>
    %195 = arith.addf %194, %30 : vector<2x512xf32>
    %196 = arith.maximumf %192, %195 : vector<2x512xf32>
    %c2_i32_72 = arith.constant 2 : i32
    %197 = tpu.dynamic_rotate %192 by %c2_i32_72 dim 1 : vector<2x512xf32>, i32 -> vector<2x512xf32>
    %198 = arith.addf %197, %46 : vector<2x512xf32>
    %199 = arith.maximumf %196, %198 : vector<2x512xf32>
    %c511_i32_73 = arith.constant 511 : i32
    %200 = tpu.dynamic_rotate %192 by %c511_i32_73 dim 1 : vector<2x512xf32>, i32 -> vector<2x512xf32>
    %201 = arith.addf %200, %62 : vector<2x512xf32>
    %202 = arith.maximumf %199, %201 : vector<2x512xf32>
    %c510_i32_74 = arith.constant 510 : i32
    %203 = tpu.dynamic_rotate %192 by %c510_i32_74 dim 1 : vector<2x512xf32>, i32 -> vector<2x512xf32>
    %204 = arith.addf %203, %78 : vector<2x512xf32>
    %205 = arith.maximumf %202, %204 : vector<2x512xf32>
    %c16_i32_75 = arith.constant 16 : i32
    %206 = tpu.dynamic_rotate %205 by %c16_i32_75 dim 1 : vector<2x512xf32>, i32 -> vector<2x512xf32>
    %207 = arith.addf %206, %94 : vector<2x512xf32>
    %208 = arith.maximumf %205, %207 : vector<2x512xf32>
    %c32_i32_76 = arith.constant 32 : i32
    %209 = tpu.dynamic_rotate %205 by %c32_i32_76 dim 1 : vector<2x512xf32>, i32 -> vector<2x512xf32>
    %210 = arith.addf %209, %110 : vector<2x512xf32>
    %211 = arith.maximumf %208, %210 : vector<2x512xf32>
    %c496_i32_77 = arith.constant 496 : i32
    %212 = tpu.dynamic_rotate %205 by %c496_i32_77 dim 1 : vector<2x512xf32>, i32 -> vector<2x512xf32>
    %213 = arith.addf %212, %126 : vector<2x512xf32>
    %214 = arith.maximumf %211, %213 : vector<2x512xf32>
    %c480_i32_78 = arith.constant 480 : i32
    %215 = tpu.dynamic_rotate %205 by %c480_i32_78 dim 1 : vector<2x512xf32>, i32 -> vector<2x512xf32>
    %216 = arith.addf %215, %142 : vector<2x512xf32>
    %217 = arith.maximumf %214, %216 : vector<2x512xf32>
    %c6 = arith.constant 6 : index
    %c0_79 = arith.constant 0 : index
    %218 = vector.load %arg9[%c6, %c0_79] : memref<8x512xf32, #tpu.memory_space<vmem>>, vector<2x512xf32>
    tpu.vector_store %arg9[%c6, %c0_79], %217 {strides = array<i32>} : memref<8x512xf32, #tpu.memory_space<vmem>>, vector<2x512xf32>,
    %c0_80 = arith.constant 0 : index
    %c0_81 = arith.constant 0 : index
    %219 = vector.load %arg6[%c0_80, %c0_81] : memref<8x8xbf16, #tpu.memory_space<vmem>>, vector<8x8xbf16>
    %c0_82 = arith.constant 0 : index
    %c0_83 = arith.constant 0 : index
    %220 = vector.load %arg9[%c0_82, %c0_83] : memref<8x512xf32, #tpu.memory_space<vmem>>, vector<8x512xf32>
    %221 = arith.truncf %220 : vector<8x512xf32> to vector<8x512xbf16>
    %cst_84 = arith.constant dense<0.000000e+00> : vector<8x512xf32>
    %222 = tpu.matmul %219, %221, %cst_84 {dimension_numbers = #tpu.dot_dimension_numbers<[1], [0], [0], [1], [0, 0, 1, 1], [], []>} : vector<8x8xbf16>, vector<8x512xbf16>, vector<8x512xf32> -> vector<8x512xf32>
    %c0_85 = arith.constant 0 : index
    %c0_86 = arith.constant 0 : index
    %223 = vector.load %arg7[%c0_85, %c0_86] : memref<8x1xf32, #tpu.memory_space<vmem>>, vector<8x1xf32>
    %224 = vector.broadcast %223 : vector<8x1xf32> to vector<8x512xf32>
    %225 = arith.addf %222, %224 : vector<8x512xf32>
    %cst_87 = arith.constant 0.000000e+00 : f32
    %226 = vector.broadcast %cst_87 : f32 to vector<8x512xf32>
    %227 = arith.subf %226, %225 : vector<8x512xf32>
    %228 = math.exp %227 : vector<8x512xf32>
    %cst_88 = arith.constant 1.000000e+00 : f32
    %229 = vector.broadcast %cst_88 : f32 to vector<8x512xf32>
    %230 = arith.addf %229, %228 : vector<8x512xf32>
    %231 = tpu.reciprocal %230 {approx = true} : vector<8x512xf32> -> vector<8x512xf32>
    %232 = arith.mulf %225, %231 : vector<8x512xf32>
    %c0_89 = arith.constant 0 : index
    %c0_90 = arith.constant 0 : index
    %233 = vector.load %arg8[%c0_89, %c0_90] : memref<8x512xf32, #tpu.memory_space<vmem>>, vector<8x512xf32>
    tpu.vector_store %arg8[%c0_89, %c0_90], %232 {strides = array<i32>} : memref<8x512xf32, #tpu.memory_space<vmem>>, vector<8x512xf32>,
    return
  }
  func.func @transform_0(%arg0: i32) -> (i32, i32) {
    %c0_i32 = arith.constant 0 : i32
    %c0_i32_0 = arith.constant 0 : i32
    return %c0_i32, %arg0 : i32, i32
  }
  func.func @transform_1(%arg0: i32) -> (i32, i32) {
    %c0_i32 = arith.constant 0 : i32
    %c0_i32_0 = arith.constant 0 : i32
    %c0_i32_1 = arith.constant 0 : i32
    return %c0_i32, %c0_i32_0 : i32, i32
  }
  func.func @transform_2(%arg0: i32) -> (i32, i32) {
    %c0_i32 = arith.constant 0 : i32
    %c0_i32_0 = arith.constant 0 : i32
    %c0_i32_1 = arith.constant 0 : i32
    return %c0_i32, %c0_i32_0 : i32, i32
  }
  func.func @transform_3(%arg0: i32) -> (i32, i32) {
    %c0_i32 = arith.constant 0 : i32
    %c0_i32_0 = arith.constant 0 : i32
    %c0_i32_1 = arith.constant 0 : i32
    return %c0_i32, %c0_i32_0 : i32, i32
  }
  func.func @transform_4(%arg0: i32) -> (i32, i32) {
    %c0_i32 = arith.constant 0 : i32
    %c0_i32_0 = arith.constant 0 : i32
    %c0_i32_1 = arith.constant 0 : i32
    return %c0_i32, %c0_i32_0 : i32, i32
  }
  func.func @transform_5(%arg0: i32) -> (i32, i32) {
    %c0_i32 = arith.constant 0 : i32
    %c0_i32_0 = arith.constant 0 : i32
    %c0_i32_1 = arith.constant 0 : i32
    return %c0_i32, %c0_i32_0 : i32, i32
  }
  func.func @transform_6(%arg0: i32) -> (i32, i32) {
    %c0_i32 = arith.constant 0 : i32
    %c0_i32_0 = arith.constant 0 : i32
    %c0_i32_1 = arith.constant 0 : i32
    return %c0_i32, %c0_i32_0 : i32, i32
  }
  func.func @transform_7(%arg0: i32) -> (i32, i32) {
    %c0_i32 = arith.constant 0 : i32
    %c0_i32_0 = arith.constant 0 : i32
    return %c0_i32, %arg0 : i32, i32
  }
}

</mosaic_0001>

<llo_original>
// kernel: sppf_forward.1
$region0: #{sppf_forward.1}
  #allocation0 [shape = 'u32[]', space=smem, size = 0x4, offset = 0x4, fixed_abs, tag = 'smem constant byte address 0x4 - core index']
  #allocation1 [shape = 'u32[72,128]{1,0:T(1,128)}', space=vmem, size = 0x9000, scoped, tag = 'internal scratch']
  #allocation2 [shape = 'f32[8,512]{1,0:T(8,128)}', space=vmem, size = 0x4000, scoped, tag = 'scratch operand']
  %s0 = inlined_call_operand.vmem [shape: bf16[4,512], index: 0, kind: input, shape index: {}]
  %s1 = inlined_call_operand.vmem [shape: f32[1,512], index: 1, kind: input, shape index: {}]
  %s2 = inlined_call_operand.vmem [shape: f32[1,512], index: 2, kind: input, shape index: {}]
  %s3 = inlined_call_operand.vmem [shape: bf16[2,4], index: 3, kind: input, shape index: {}]
  %s4 = inlined_call_operand.vmem [shape: f32[2,1], index: 4, kind: input, shape index: {}]
  %s5 = inlined_call_operand.vmem [shape: bf16[8,8], index: 5, kind: input, shape index: {}]
  %s6 = inlined_call_operand.vmem [shape: f32[8,1], index: 6, kind: input, shape index: {}]
  %s7 = inlined_call_operand.vmem [shape: f32[8,512], index: 7, kind: output, shape index: {}]
  %s8 = sld [smem:[#allocation0]]
  $region38: #{sppf_forward.1} parent=0
    _
  %s10 = ssub.s32 1, %s8
  %s11 = scalar_select 0, %s10, %s8
  // Predicated region
  $region2: #{sppf_forward.1} parent=0 // pred_check
    _
  $region3: #{sppf_forward.1} parent=0 // pred_check_branch
    %13 = sbr.rel (0) target = $region5
  $region4: #{sppf_forward.1} parent=0 // pred_region
    _
  $region5: #{sppf_forward.1} parent=0 // pred_fallthru
    _
  // Predicated region
  $region6: #{sppf_forward.1} parent=0 // pred_check
    _
  $region7: #{sppf_forward.1} parent=0 // pred_check_branch
    %15 = sbr.rel (0) target = $region9
  $region8: #{sppf_forward.1} parent=0 // pred_region
    _
  $region9: #{sppf_forward.1} parent=0 // pred_fallthru
    _
  // Predicated region
  $region10: #{sppf_forward.1} parent=0 // pred_check
    _
  $region11: #{sppf_forward.1} parent=0 // pred_check_branch
    %17 = sbr.rel (0) target = $region13
  $region12: #{sppf_forward.1} parent=0 // pred_region
    _
  $region13: #{sppf_forward.1} parent=0 // pred_fallthru
    _
  // Predicated region
  $region14: #{sppf_forward.1} parent=0 // pred_check
    _
  $region15: #{sppf_forward.1} parent=0 // pred_check_branch
    %19 = sbr.rel (0) target = $region17
  $region16: #{sppf_forward.1} parent=0 // pred_region
    _
  $region17: #{sppf_forward.1} parent=0 // pred_fallthru
    _
  // Predicated region
  $region18: #{sppf_forward.1} parent=0 // pred_check
    _
  $region19: #{sppf_forward.1} parent=0 // pred_check_branch
    %21 = sbr.rel (0) target = $region21
  $region20: #{sppf_forward.1} parent=0 // pred_region
    _
  $region21: #{sppf_forward.1} parent=0 // pred_fallthru
    _
  // Predicated region
  $region22: #{sppf_forward.1} parent=0 // pred_check
    _
  $region23: #{sppf_forward.1} parent=0 // pred_check_branch
    %23 = sbr.rel (0) target = $region25
  $region24: #{sppf_forward.1} parent=0 // pred_region
    _
  $region25: #{sppf_forward.1} parent=0 // pred_fallthru
    _
  // Predicated region
  $region26: #{sppf_forward.1} parent=0 // pred_check
    _
  $region27: #{sppf_forward.1} parent=0 // pred_check_branch
    %25 = sbr.rel (0) target = $region29
  $region28: #{sppf_forward.1} parent=0 // pred_region
    _
  $region29: #{sppf_forward.1} parent=0 // pred_fallthru
    _
  %v27 = vld [vmem:[%s0] sm:$0xff]
  %v28 = vld [vmem:[%s1] sm:$0xf]
  %v29 = vld [vmem:[%s2] sm:$0xf]
  %v30 = vld [vmem:[%s3] sm:$0x1]
  %v31 = vld [vmem:[%s4] sm:$0x3]
  %33 = vset.pattern.permute.xlu0 0
  %34 = vperm.xlu0 %33, %v31
  %v35 = vpop.permute.xlu0 %34
  %38 = vst [vmem:[#allocation1] ss:$4 sm:$0xff] %v27
  %v39 = vld.sshfl [vmem:[#allocation1] sm:$0xff pattern:$0x73625140]
  %v40 = vld.sshfl [vmem:[#allocation1 + $0x8] sm:$0xff pattern:$0x73625140]
  %v41 = vld.sshfl [vmem:[#allocation1 + $0x10] sm:$0xff pattern:$0x73625140]
  %v42 = vld.sshfl [vmem:[#allocation1 + $0x18] sm:$0xff pattern:$0x73625140]
  %vm43 = vcmask 31744
  %v45 = vsel %vm43, %v30, 0
  %vm47 = vcmask 1041408
  %v48 = vsel %vm47, %v39, 0
  %v50 = vsel %vm47, %v40, 0
  %v52 = vsel %vm47, %v41, 0
  %v54 = vsel %vm47, %v42, 0
  %56 = vmatpush.bf16.msra.mxu0 0
  %57 = vmatpush.bf16.msra.mxu0 0
  %58 = vmatpush.bf16.msra.mxu0 0
  %59 = vmatpush.bf16.msra.mxu0 0
  %60 = vmatpush.bf16.msra.mxu0 0
  %61 = vmatpush.bf16.msra.mxu0 0
  %62 = vmatpush.bf16.msra.mxu0 0
  %63 = vmatpush.bf16.msra.mxu0 %v48
  %64 = vmatmul.bf16.gmra.mxu0 %v45
  %v65 = vpop.f32.mrf.mxu0
  %v66 = vadd.f32 %v35, %v65
  %v67 = vpop.f32.mrf.mxu0
  %68 = vdwg.mxu0
  %69 = vmatpush.bf16.msra.mxu0 0
  %70 = vmatpush.bf16.msra.mxu0 0
  %71 = vmatpush.bf16.msra.mxu0 0
  %72 = vmatpush.bf16.msra.mxu0 0
  %73 = vmatpush.bf16.msra.mxu0 0
  %74 = vmatpush.bf16.msra.mxu0 0
  %75 = vmatpush.bf16.msra.mxu0 0
  %76 = vmatpush.bf16.msra.mxu0 %v50
  %77 = vmatmul.bf16.gmra.mxu0 %v45
  %v78 = vpop.f32.mrf.mxu0
  %v79 = vadd.f32 %v35, %v78
  %v80 = vpop.f32.mrf.mxu0
  %81 = vdwg.mxu0
  %82 = vmatpush.bf16.msra.mxu0 0
  %83 = vmatpush.bf16.msra.mxu0 0
  %84 = vmatpush.bf16.msra.mxu0 0
  %85 = vmatpush.bf16.msra.mxu0 0
  %86 = vmatpush.bf16.msra.mxu0 0
  %87 = vmatpush.bf16.msra.mxu0 0
  %88 = vmatpush.bf16.msra.mxu0 0
  %89 = vmatpush.bf16.msra.mxu0 %v52
  %90 = vmatmul.bf16.gmra.mxu0 %v45
  %v91 = vpop.f32.mrf.mxu0
  %v92 = vadd.f32 %v35, %v91
  %v93 = vpop.f32.mrf.mxu0
  %94 = vdwg.mxu0
  %95 = vmatpush.bf16.msra.mxu0 0
  %96 = vmatpush.bf16.msra.mxu0 0
  %97 = vmatpush.bf16.msra.mxu0 0
  %98 = vmatpush.bf16.msra.mxu0 0
  %99 = vmatpush.bf16.msra.mxu0 0
  %100 = vmatpush.bf16.msra.mxu0 0
  %101 = vmatpush.bf16.msra.mxu0 0
  %102 = vmatpush.bf16.msra.mxu0 %v54
  %103 = vmatmul.bf16.gmra.mxu0 %v45
  %v104 = vpop.f32.mrf.mxu0
  %v105 = vadd.f32 %v35, %v104
  %v106 = vpop.f32.mrf.mxu0
  %107 = vdwg.mxu0
  %v108 = vsub.f32 0.0, %v66
  %v109 = vsub.f32 0.0, %v79
  %v110 = vsub.f32 0.0, %v92
  %v111 = vsub.f32 0.0, %v105
  %v112 = vmul.f32 %v108, 1.442695
  %v113 = vpow.pop %v112
  %v114 = vmul.f32 %v109, 1.442695
  %v115 = vpow.pop %v114
  %v116 = vmul.f32 %v110, 1.442695
  %v117 = vpow.pop %v116
  %v118 = vmul.f32 %v111, 1.442695
  %v119 = vpow.pop %v118
  %v120 = vadd.f32 %v113, 1.0
  %v121 = vadd.f32 %v115, 1.0
  %v122 = vadd.f32 %v117, 1.0
  %v123 = vadd.f32 %v119, 1.0
  %v124 = vrcp.pop %v120
  %v125 = vrcp.pop %v121
  %v126 = vrcp.pop %v122
  %v127 = vrcp.pop %v123
  %v128 = vmul.f32 %v66, %v124
  %v129 = vmul.f32 %v79, %v125
  %v130 = vmul.f32 %v92, %v126
  %v131 = vmul.f32 %v105, %v127
  %v133 = vperm.slane %v28, 0
  %v134 = vperm.slane %v28, 1
  %v135 = vperm.slane %v28, 2
  %v136 = vperm.slane %v28, 3
  %141 = vrot.lane.b32.xlu0 %v133, 1
  %v142 = vpop.permute.xlu0 %141
  %143 = vrot.lane.b32.xlu0 %v134, 1
  %v144 = vpop.permute.xlu0 %143
  %145 = vrot.lane.b32.xlu0 %v135, 1
  %v146 = vpop.permute.xlu0 %145
  %147 = vrot.lane.b32.xlu0 %v136, 1
  %v148 = vpop.permute.xlu0 %147
  %v149 = vlaneseq
  %v150 = vand.u32 %v149, 127
  %vm151 = vcmp.lt.s32.totalorder %v150, 1
  %v152 = vsel %vm151, %v146, %v148
  %v153 = vsel %vm151, %v144, %v146
  %v154 = vsel %vm151, %v142, %v144
  %v155 = vsel %vm151, %v148, %v142
  %v157 = vperm.slane %v29, 0
  %v158 = vperm.slane %v29, 1
  %v159 = vperm.slane %v29, 2
  %v160 = vperm.slane %v29, 3
  %165 = vrot.lane.b32.xlu0 %v157, 1
  %v166 = vpop.permute.xlu0 %165
  %167 = vrot.lane.b32.xlu0 %v158, 1
  %v168 = vpop.permute.xlu0 %167
  %169 = vrot.lane.b32.xlu0 %v159, 1
  %v170 = vpop.permute.xlu0 %169
  %171 = vrot.lane.b32.xlu0 %v160, 1
  %v172 = vpop.permute.xlu0 %171
  %v173 = vsel %vm151, %v170, %v172
  %v174 = vsel %vm151, %v168, %v170
  %v175 = vsel %vm151, %v166, %v168
  %v176 = vsel %vm151, %v172, %v166
  %v177 = vsub.f32 %v155, %v133
  %v178 = vsub.f32 %v154, %v134
  %v179 = vsub.f32 %v153, %v135
  %v180 = vsub.f32 %v152, %v136
  %v181 = vand.u32 2147483647, %v177
  %v182 = vand.u32 2147483647, %v178
  %v183 = vand.u32 2147483647, %v179
  %v184 = vand.u32 2147483647, %v180
  %vm185 = vcmp.le.f32.partialorder %v181, 0.0
  %vm186 = vcmp.le.f32.partialorder %v182, 0.0
  %vm187 = vcmp.le.f32.partialorder %v183, 0.0
  %vm188 = vcmp.le.f32.partialorder %v184, 0.0
  %v189 = vsub.f32 %v176, %v157
  %v190 = vsub.f32 %v175, %v158
  %v191 = vsub.f32 %v174, %v159
  %v192 = vsub.f32 %v173, %v160
  %v193 = vand.u32 2147483647, %v189
  %v194 = vand.u32 2147483647, %v190
  %v195 = vand.u32 2147483647, %v191
  %v196 = vand.u32 2147483647, %v192
  %vm197 = vcmp.le.f32.partialorder %v193, 2.0
  %vm198 = vcmp.le.f32.partialorder %v194, 2.0
  %vm199 = vcmp.le.f32.partialorder %v195, 2.0
  %vm200 = vcmp.le.f32.partialorder %v196, 2.0
  %vm201 = vmand %vm185, %vm197
  %vm202 = vmand %vm186, %vm198
  %vm203 = vmand %vm187, %vm199
  %vm204 = vmand %vm188, %vm200
  %v205 = vsel %vm201, 0.0, -1e+30
  %v206 = vsel %vm202, 0.0, -1e+30
  %v207 = vsel %vm203, 0.0, -1e+30
  %v208 = vsel %vm204, 0.0, -1e+30
  %v209 = vperm.slane %v205, 0
  %v210 = vperm.slane %v206, 0
  %v211 = vperm.slane %v207, 0
  %v212 = vperm.slane %v208, 0
  %213 = vrot.lane.b32.xlu0 %v133, 2
  %v214 = vpop.permute.xlu0 %213
  %215 = vrot.lane.b32.xlu0 %v134, 2
  %v216 = vpop.permute.xlu0 %215
  %217 = vrot.lane.b32.xlu0 %v135, 2
  %v218 = vpop.permute.xlu0 %217
  %219 = vrot.lane.b32.xlu0 %v136, 2
  %v220 = vpop.permute.xlu0 %219
  %vm221 = vcmp.lt.s32.totalorder %v150, 2
  %v222 = vsel %vm221, %v218, %v220
  %v223 = vsel %vm221, %v216, %v218
  %v224 = vsel %vm221, %v214, %v216
  %v225 = vsel %vm221, %v220, %v214
  %226 = vrot.lane.b32.xlu0 %v157, 2
  %v227 = vpop.permute.xlu0 %226
  %228 = vrot.lane.b32.xlu0 %v158, 2
  %v229 = vpop.permute.xlu0 %228
  %230 = vrot.lane.b32.xlu0 %v159, 2
  %v231 = vpop.permute.xlu0 %230
  %232 = vrot.lane.b32.xlu0 %v160, 2
  %v233 = vpop.permute.xlu0 %232
  %v234 = vsel %vm221, %v231, %v233
  %v235 = vsel %vm221, %v229, %v231
  %v236 = vsel %vm221, %v227, %v229
  %v237 = vsel %vm221, %v233, %v227
  %v238 = vsub.f32 %v225, %v133
  %v239 = vsub.f32 %v224, %v134
  %v240 = vsub.f32 %v223, %v135
  %v241 = vsub.f32 %v222, %v136
  %v242 = vand.u32 2147483647, %v238
  %v243 = vand.u32 2147483647, %v239
  %v244 = vand.u32 2147483647, %v240
  %v245 = vand.u32 2147483647, %v241
  %vm246 = vcmp.le.f32.partialorder %v242, 0.0
  %vm247 = vcmp.le.f32.partialorder %v243, 0.0
  %vm248 = vcmp.le.f32.partialorder %v244, 0.0
  %vm249 = vcmp.le.f32.partialorder %v245, 0.0
  %v250 = vsub.f32 %v237, %v157
  %v251 = vsub.f32 %v236, %v158
  %v252 = vsub.f32 %v235, %v159
  %v253 = vsub.f32 %v234, %v160
  %v254 = vand.u32 2147483647, %v250
  %v255 = vand.u32 2147483647, %v251
  %v256 = vand.u32 2147483647, %v252
  %v257 = vand.u32 2147483647, %v253
  %vm258 = vcmp.le.f32.partialorder %v254, 2.0
  %vm259 = vcmp.le.f32.partialorder %v255, 2.0
  %vm260 = vcmp.le.f32.partialorder %v256, 2.0
  %vm261 = vcmp.le.f32.partialorder %v257, 2.0
  %vm262 = vmand %vm246, %vm258
  %vm263 = vmand %vm247, %vm259
  %vm264 = vmand %vm248, %vm260
  %vm265 = vmand %vm249, %vm261
  %v266 = vsel %vm262, 0.0, -1e+30
  %v267 = vsel %vm263, 0.0, -1e+30
  %v268 = vsel %vm264, 0.0, -1e+30
  %v269 = vsel %vm265, 0.0, -1e+30
  %v270 = vperm.slane %v266, 0
  %v271 = vperm.slane %v267, 0
  %v272 = vperm.slane %v268, 0
  %v273 = vperm.slane %v269, 0
  %274 = vrot.lane.b32.xlu0 %v133, 127
  %v275 = vpop.permute.xlu0 %274
  %276 = vrot.lane.b32.xlu0 %v134, 127
  %v277 = vpop.permute.xlu0 %276
  %278 = vrot.lane.b32.xlu0 %v135, 127
  %v279 = vpop.permute.xlu0 %278
  %280 = vrot.lane.b32.xlu0 %v136, 127
  %v281 = vpop.permute.xlu0 %280
  %vm282 = vcmp.lt.s32.totalorder %v150, 127
  %v283 = vsel %vm282, %v279, %v281
  %v284 = vsel %vm282, %v277, %v279
  %v285 = vsel %vm282, %v275, %v277
  %v286 = vsel %vm282, %v281, %v275
  %287 = vrot.lane.b32.xlu0 %v157, 127
  %v288 = vpop.permute.xlu0 %287
  %289 = vrot.lane.b32.xlu0 %v158, 127
  %v290 = vpop.permute.xlu0 %289
  %291 = vrot.lane.b32.xlu0 %v159, 127
  %v292 = vpop.permute.xlu0 %291
  %293 = vrot.lane.b32.xlu0 %v160, 127
  %v294 = vpop.permute.xlu0 %293
  %v295 = vsel %vm282, %v292, %v294
  %v296 = vsel %vm282, %v290, %v292
  %v297 = vsel %vm282, %v288, %v290
  %v298 = vsel %vm282, %v294, %v288
  %v299 = vsub.f32 %v285, %v133
  %v300 = vsub.f32 %v284, %v134
  %v301 = vsub.f32 %v283, %v135
  %v302 = vsub.f32 %v286, %v136
  %v303 = vand.u32 2147483647, %v299
  %v304 = vand.u32 2147483647, %v300
  %v305 = vand.u32 2147483647, %v301
  %v306 = vand.u32 2147483647, %v302
  %vm307 = vcmp.le.f32.partialorder %v303, 0.0
  %vm308 = vcmp.le.f32.partialorder %v304, 0.0
  %vm309 = vcmp.le.f32.partialorder %v305, 0.0
  %vm310 = vcmp.le.f32.partialorder %v306, 0.0
  %v311 = vsub.f32 %v297, %v157
  %v312 = vsub.f32 %v296, %v158
  %v313 = vsub.f32 %v295, %v159
  %v314 = vsub.f32 %v298, %v160
  %v315 = vand.u32 2147483647, %v311
  %v316 = vand.u32 2147483647, %v312
  %v317 = vand.u32 2147483647, %v313
  %v318 = vand.u32 2147483647, %v314
  %vm319 = vcmp.le.f32.partialorder %v315, 2.0
  %vm320 = vcmp.le.f32.partialorder %v316, 2.0
  %vm321 = vcmp.le.f32.partialorder %v317, 2.0
  %vm322 = vcmp.le.f32.partialorder %v318, 2.0
  %vm323 = vmand %vm307, %vm319
  %vm324 = vmand %vm308, %vm320
  %vm325 = vmand %vm309, %vm321
  %vm326 = vmand %vm310, %vm322
  %v327 = vsel %vm323, 0.0, -1e+30
  %v328 = vsel %vm324, 0.0, -1e+30
  %v329 = vsel %vm325, 0.0, -1e+30
  %v330 = vsel %vm326, 0.0, -1e+30
  %v331 = vperm.slane %v327, 0
  %v332 = vperm.slane %v328, 0
  %v333 = vperm.slane %v329, 0
  %v334 = vperm.slane %v330, 0
  %335 = vrot.lane.b32.xlu0 %v133, 126
  %v336 = vpop.permute.xlu0 %335
  %337 = vrot.lane.b32.xlu0 %v134, 126
  %v338 = vpop.permute.xlu0 %337
  %339 = vrot.lane.b32.xlu0 %v135, 126
  %v340 = vpop.permute.xlu0 %339
  %341 = vrot.lane.b32.xlu0 %v136, 126
  %v342 = vpop.permute.xlu0 %341
  %vm343 = vcmp.lt.s32.totalorder %v150, 126
  %v344 = vsel %vm343, %v340, %v342
  %v345 = vsel %vm343, %v338, %v340
  %v346 = vsel %vm343, %v336, %v338
  %v347 = vsel %vm343, %v342, %v336
  %348 = vrot.lane.b32.xlu0 %v157, 126
  %v349 = vpop.permute.xlu0 %348
  %350 = vrot.lane.b32.xlu0 %v158, 126
  %v351 = vpop.permute.xlu0 %350
  %352 = vrot.lane.b32.xlu0 %v159, 126
  %v353 = vpop.permute.xlu0 %352
  %354 = vrot.lane.b32.xlu0 %v160, 126
  %v355 = vpop.permute.xlu0 %354
  %v356 = vsel %vm343, %v353, %v355
  %v357 = vsel %vm343, %v351, %v353
  %v358 = vsel %vm343, %v349, %v351
  %v359 = vsel %vm343, %v355, %v349
  %v360 = vsub.f32 %v346, %v133
  %v361 = vsub.f32 %v345, %v134
  %v362 = vsub.f32 %v344, %v135
  %v363 = vsub.f32 %v347, %v136
  %v364 = vand.u32 2147483647, %v360
  %v365 = vand.u32 2147483647, %v361
  %v366 = vand.u32 2147483647, %v362
  %v367 = vand.u32 2147483647, %v363
  %vm368 = vcmp.le.f32.partialorder %v364, 0.0
  %vm369 = vcmp.le.f32.partialorder %v365, 0.0
  %vm370 = vcmp.le.f32.partialorder %v366, 0.0
  %vm371 = vcmp.le.f32.partialorder %v367, 0.0
  %v372 = vsub.f32 %v358, %v157
  %v373 = vsub.f32 %v357, %v158
  %v374 = vsub.f32 %v356, %v159
  %v375 = vsub.f32 %v359, %v160
  %v376 = vand.u32 2147483647, %v372
  %v377 = vand.u32 2147483647, %v373
  %v378 = vand.u32 2147483647, %v374
  %v379 = vand.u32 2147483647, %v375
  %vm380 = vcmp.le.f32.partialorder %v376, 2.0
  %vm381 = vcmp.le.f32.partialorder %v377, 2.0
  %vm382 = vcmp.le.f32.partialorder %v378, 2.0
  %vm383 = vcmp.le.f32.partialorder %v379, 2.0
  %vm384 = vmand %vm368, %vm380
  %vm385 = vmand %vm369, %vm381
  %vm386 = vmand %vm370, %vm382
  %vm387 = vmand %vm371, %vm383
  %v388 = vsel %vm384, 0.0, -1e+30
  %v389 = vsel %vm385, 0.0, -1e+30
  %v390 = vsel %vm386, 0.0, -1e+30
  %v391 = vsel %vm387, 0.0, -1e+30
  %v392 = vperm.slane %v388, 0
  %v393 = vperm.slane %v389, 0
  %v394 = vperm.slane %v390, 0
  %v395 = vperm.slane %v391, 0
  %396 = vrot.lane.b32.xlu0 %v133, 16
  %v397 = vpop.permute.xlu0 %396
  %398 = vrot.lane.b32.xlu0 %v134, 16
  %v399 = vpop.permute.xlu0 %398
  %400 = vrot.lane.b32.xlu0 %v135, 16
  %v401 = vpop.permute.xlu0 %400
  %402 = vrot.lane.b32.xlu0 %v136, 16
  %v403 = vpop.permute.xlu0 %402
  %vm404 = vcmp.lt.s32.totalorder %v150, 16
  %v405 = vsel %vm404, %v401, %v403
  %v406 = vsel %vm404, %v399, %v401
  %v407 = vsel %vm404, %v397, %v399
  %v408 = vsel %vm404, %v403, %v397
  %409 = vrot.lane.b32.xlu0 %v157, 16
  %v410 = vpop.permute.xlu0 %409
  %411 = vrot.lane.b32.xlu0 %v158, 16
  %v412 = vpop.permute.xlu0 %411
  %413 = vrot.lane.b32.xlu0 %v159, 16
  %v414 = vpop.permute.xlu0 %413
  %415 = vrot.lane.b32.xlu0 %v160, 16
  %v416 = vpop.permute.xlu0 %415
  %v417 = vsel %vm404, %v414, %v416
  %v418 = vsel %vm404, %v412, %v414
  %v419 = vsel %vm404, %v410, %v412
  %v420 = vsel %vm404, %v416, %v410
  %v421 = vsub.f32 %v408, %v133
  %v422 = vsub.f32 %v407, %v134
  %v423 = vsub.f32 %v406, %v135
  %v424 = vsub.f32 %v405, %v136
  %v425 = vand.u32 2147483647, %v421
  %v426 = vand.u32 2147483647, %v422
  %v427 = vand.u32 2147483647, %v423
  %v428 = vand.u32 2147483647, %v424
  %vm429 = vcmp.le.f32.partialorder %v425, 2.0
  %vm430 = vcmp.le.f32.partialorder %v426, 2.0
  %vm431 = vcmp.le.f32.partialorder %v427, 2.0
  %vm432 = vcmp.le.f32.partialorder %v428, 2.0
  %v433 = vsub.f32 %v420, %v157
  %v434 = vsub.f32 %v419, %v158
  %v435 = vsub.f32 %v418, %v159
  %v436 = vsub.f32 %v417, %v160
  %v437 = vand.u32 2147483647, %v433
  %v438 = vand.u32 2147483647, %v434
  %v439 = vand.u32 2147483647, %v435
  %v440 = vand.u32 2147483647, %v436
  %vm441 = vcmp.le.f32.partialorder %v437, 0.0
  %vm442 = vcmp.le.f32.partialorder %v438, 0.0
  %vm443 = vcmp.le.f32.partialorder %v439, 0.0
  %vm444 = vcmp.le.f32.partialorder %v440, 0.0
  %vm445 = vmand %vm429, %vm441
  %vm446 = vmand %vm430, %vm442
  %vm447 = vmand %vm431, %vm443
  %vm448 = vmand %vm432, %vm444
  %v449 = vsel %vm445, 0.0, -1e+30
  %v450 = vsel %vm446, 0.0, -1e+30
  %v451 = vsel %vm447, 0.0, -1e+30
  %v452 = vsel %vm448, 0.0, -1e+30
  %v453 = vperm.slane %v449, 0
  %v454 = vperm.slane %v450, 0
  %v455 = vperm.slane %v451, 0
  %v456 = vperm.slane %v452, 0
  %457 = vrot.lane.b32.xlu0 %v133, 32
  %v458 = vpop.permute.xlu0 %457
  %459 = vrot.lane.b32.xlu0 %v134, 32
  %v460 = vpop.permute.xlu0 %459
  %461 = vrot.lane.b32.xlu0 %v135, 32
  %v462 = vpop.permute.xlu0 %461
  %463 = vrot.lane.b32.xlu0 %v136, 32
  %v464 = vpop.permute.xlu0 %463
  %vm465 = vcmp.lt.s32.totalorder %v150, 32
  %v466 = vsel %vm465, %v462, %v464
  %v467 = vsel %vm465, %v460, %v462
  %v468 = vsel %vm465, %v458, %v460
  %v469 = vsel %vm465, %v464, %v458
  %470 = vrot.lane.b32.xlu0 %v157, 32
  %v471 = vpop.permute.xlu0 %470
  %472 = vrot.lane.b32.xlu0 %v158, 32
  %v473 = vpop.permute.xlu0 %472
  %474 = vrot.lane.b32.xlu0 %v159, 32
  %v475 = vpop.permute.xlu0 %474
  %476 = vrot.lane.b32.xlu0 %v160, 32
  %v477 = vpop.permute.xlu0 %476
  %v478 = vsel %vm465, %v475, %v477
  %v479 = vsel %vm465, %v473, %v475
  %v480 = vsel %vm465, %v471, %v473
  %v481 = vsel %vm465, %v477, %v471
  %v482 = vsub.f32 %v469, %v133
  %v483 = vsub.f32 %v468, %v134
  %v484 = vsub.f32 %v467, %v135
  %v485 = vsub.f32 %v466, %v136
  %v486 = vand.u32 2147483647, %v482
  %v487 = vand.u32 2147483647, %v483
  %v488 = vand.u32 2147483647, %v484
  %v489 = vand.u32 2147483647, %v485
  %vm490 = vcmp.le.f32.partialorder %v486, 2.0
  %vm491 = vcmp.le.f32.partialorder %v487, 2.0
  %vm492 = vcmp.le.f32.partialorder %v488, 2.0
  %vm493 = vcmp.le.f32.partialorder %v489, 2.0
  %v494 = vsub.f32 %v481, %v157
  %v495 = vsub.f32 %v480, %v158
  %v496 = vsub.f32 %v479, %v159
  %v497 = vsub.f32 %v478, %v160
  %v498 = vand.u32 2147483647, %v494
  %v499 = vand.u32 2147483647, %v495
  %v500 = vand.u32 2147483647, %v496
  %v501 = vand.u32 2147483647, %v497
  %vm502 = vcmp.le.f32.partialorder %v498, 0.0
  %vm503 = vcmp.le.f32.partialorder %v499, 0.0
  %vm504 = vcmp.le.f32.partialorder %v500, 0.0
  %vm505 = vcmp.le.f32.partialorder %v501, 0.0
  %vm506 = vmand %vm490, %vm502
  %vm507 = vmand %vm491, %vm503
  %vm508 = vmand %vm492, %vm504
  %vm509 = vmand %vm493, %vm505
  %v510 = vsel %vm506, 0.0, -1e+30
  %v511 = vsel %vm507, 0.0, -1e+30
  %v512 = vsel %vm508, 0.0, -1e+30
  %v513 = vsel %vm509, 0.0, -1e+30
  %v514 = vperm.slane %v510, 0
  %v515 = vperm.slane %v511, 0
  %v516 = vperm.slane %v512, 0
  %v517 = vperm.slane %v513, 0
  %518 = vrot.lane.b32.xlu0 %v133, 112
  %v519 = vpop.permute.xlu0 %518
  %520 = vrot.lane.b32.xlu0 %v134, 112
  %v521 = vpop.permute.xlu0 %520
  %522 = vrot.lane.b32.xlu0 %v135, 112
  %v523 = vpop.permute.xlu0 %522
  %524 = vrot.lane.b32.xlu0 %v136, 112
  %v525 = vpop.permute.xlu0 %524
  %vm526 = vcmp.lt.s32.totalorder %v150, 112
  %v527 = vsel %vm526, %v523, %v525
  %v528 = vsel %vm526, %v521, %v523
  %v529 = vsel %vm526, %v519, %v521
  %v530 = vsel %vm526, %v525, %v519
  %531 = vrot.lane.b32.xlu0 %v157, 112
  %v532 = vpop.permute.xlu0 %531
  %533 = vrot.lane.b32.xlu0 %v158, 112
  %v534 = vpop.permute.xlu0 %533
  %535 = vrot.lane.b32.xlu0 %v159, 112
  %v536 = vpop.permute.xlu0 %535
  %537 = vrot.lane.b32.xlu0 %v160, 112
  %v538 = vpop.permute.xlu0 %537
  %v539 = vsel %vm526, %v536, %v538
  %v540 = vsel %vm526, %v534, %v536
  %v541 = vsel %vm526, %v532, %v534
  %v542 = vsel %vm526, %v538, %v532
  %v543 = vsub.f32 %v529, %v133
  %v544 = vsub.f32 %v528, %v134
  %v545 = vsub.f32 %v527, %v135
  %v546 = vsub.f32 %v530, %v136
  %v547 = vand.u32 2147483647, %v543
  %v548 = vand.u32 2147483647, %v544
  %v549 = vand.u32 2147483647, %v545
  %v550 = vand.u32 2147483647, %v546
  %vm551 = vcmp.le.f32.partialorder %v547, 2.0
  %vm552 = vcmp.le.f32.partialorder %v548, 2.0
  %vm553 = vcmp.le.f32.partialorder %v549, 2.0
  %vm554 = vcmp.le.f32.partialorder %v550, 2.0
  %v555 = vsub.f32 %v541, %v157
  %v556 = vsub.f32 %v540, %v158
  %v557 = vsub.f32 %v539, %v159
  %v558 = vsub.f32 %v542, %v160
  %v559 = vand.u32 2147483647, %v555
  %v560 = vand.u32 2147483647, %v556
  %v561 = vand.u32 2147483647, %v557
  %v562 = vand.u32 2147483647, %v558
  %vm563 = vcmp.le.f32.partialorder %v559, 0.0
  %vm564 = vcmp.le.f32.partialorder %v560, 0.0
  %vm565 = vcmp.le.f32.partialorder %v561, 0.0
  %vm566 = vcmp.le.f32.partialorder %v562, 0.0
  %vm567 = vmand %vm551, %vm563
  %vm568 = vmand %vm552, %vm564
  %vm569 = vmand %vm553, %vm565
  %vm570 = vmand %vm554, %vm566
  %v571 = vsel %vm567, 0.0, -1e+30
  %v572 = vsel %vm568, 0.0, -1e+30
  %v573 = vsel %vm569, 0.0, -1e+30
  %v574 = vsel %vm570, 0.0, -1e+30
  %v575 = vperm.slane %v571, 0
  %v576 = vperm.slane %v572, 0
  %v577 = vperm.slane %v573, 0
  %v578 = vperm.slane %v574, 0
  %579 = vrot.lane.b32.xlu0 %v133, 96
  %v580 = vpop.permute.xlu0 %579
  %581 = vrot.lane.b32.xlu0 %v134, 96
  %v582 = vpop.permute.xlu0 %581
  %583 = vrot.lane.b32.xlu0 %v135, 96
  %v584 = vpop.permute.xlu0 %583
  %585 = vrot.lane.b32.xlu0 %v136, 96
  %v586 = vpop.permute.xlu0 %585
  %vm587 = vcmp.lt.s32.totalorder %v150, 96
  %v588 = vsel %vm587, %v584, %v586
  %v589 = vsel %vm587, %v582, %v584
  %v590 = vsel %vm587, %v580, %v582
  %v591 = vsel %vm587, %v586, %v580
  %592 = vrot.lane.b32.xlu0 %v157, 96
  %v593 = vpop.permute.xlu0 %592
  %594 = vrot.lane.b32.xlu0 %v158, 96
  %v595 = vpop.permute.xlu0 %594
  %596 = vrot.lane.b32.xlu0 %v159, 96
  %v597 = vpop.permute.xlu0 %596
  %598 = vrot.lane.b32.xlu0 %v160, 96
  %v599 = vpop.permute.xlu0 %598
  %v600 = vsel %vm587, %v597, %v599
  %v601 = vsel %vm587, %v595, %v597
  %v602 = vsel %vm587, %v593, %v595
  %v603 = vsel %vm587, %v599, %v593
  %v604 = vsub.f32 %v590, %v133
  %v605 = vsub.f32 %v589, %v134
  %v606 = vsub.f32 %v588, %v135
  %v607 = vsub.f32 %v591, %v136
  %v608 = vand.u32 2147483647, %v604
  %v609 = vand.u32 2147483647, %v605
  %v610 = vand.u32 2147483647, %v606
  %v611 = vand.u32 2147483647, %v607
  %vm612 = vcmp.le.f32.partialorder %v608, 2.0
  %vm613 = vcmp.le.f32.partialorder %v609, 2.0
  %vm614 = vcmp.le.f32.partialorder %v610, 2.0
  %vm615 = vcmp.le.f32.partialorder %v611, 2.0
  %v616 = vsub.f32 %v602, %v157
  %v617 = vsub.f32 %v601, %v158
  %v618 = vsub.f32 %v600, %v159
  %v619 = vsub.f32 %v603, %v160
  %v620 = vand.u32 2147483647, %v616
  %v621 = vand.u32 2147483647, %v617
  %v622 = vand.u32 2147483647, %v618
  %v623 = vand.u32 2147483647, %v619
  %vm624 = vcmp.le.f32.partialorder %v620, 0.0
  %vm625 = vcmp.le.f32.partialorder %v621, 0.0
  %vm626 = vcmp.le.f32.partialorder %v622, 0.0
  %vm627 = vcmp.le.f32.partialorder %v623, 0.0
  %vm628 = vmand %vm612, %vm624
  %vm629 = vmand %vm613, %vm625
  %vm630 = vmand %vm614, %vm626
  %vm631 = vmand %vm615, %vm627
  %v632 = vsel %vm628, 0.0, -1e+30
  %v633 = vsel %vm629, 0.0, -1e+30
  %v634 = vsel %vm630, 0.0, -1e+30
  %v635 = vsel %vm631, 0.0, -1e+30
  %v636 = vperm.slane %v632, 0
  %v637 = vperm.slane %v633, 0
  %v638 = vperm.slane %v634, 0
  %v639 = vperm.slane %v635, 0
  %640 = vst [vmem:[#allocation2] sm:$0x3] %v128
  %641 = vst [vmem:[#allocation2 + $0x8] sm:$0x3] %v129
  %642 = vst [vmem:[#allocation2 + $0x10] sm:$0x3] %v130
  %643 = vst [vmem:[#allocation2 + $0x18] sm:$0x3] %v131
  %644 = vrot.lane.b32.xlu0 %v128, 1
  %v645 = vpop.permute.xlu0 %644
  %646 = vrot.lane.b32.xlu0 %v129, 1
  %v647 = vpop.permute.xlu0 %646
  %648 = vrot.lane.b32.xlu0 %v130, 1
  %v649 = vpop.permute.xlu0 %648
  %650 = vrot.lane.b32.xlu0 %v131, 1
  %v651 = vpop.permute.xlu0 %650
  %v652 = vsel %vm151, %v649, %v651
  %v653 = vsel %vm151, %v647, %v649
  %v654 = vsel %vm151, %v645, %v647
  %v655 = vsel %vm151, %v651, %v645
  %v656 = vadd.f32 %v655, %v209
  %v657 = vadd.f32 %v654, %v210
  %v658 = vadd.f32 %v653, %v211
  %v659 = vadd.f32 %v652, %v212
  %v660 = vmax.f32 %v128, %v656
  %v661 = vmax.f32 %v129, %v657
  %v662 = vmax.f32 %v130, %v658
  %v663 = vmax.f32 %v131, %v659
  %664 = vrot.lane.b32.xlu0 %v128, 2
  %v665 = vpop.permute.xlu0 %664
  %666 = vrot.lane.b32.xlu0 %v129, 2
  %v667 = vpop.permute.xlu0 %666
  %668 = vrot.lane.b32.xlu0 %v130, 2
  %v669 = vpop.permute.xlu0 %668
  %670 = vrot.lane.b32.xlu0 %v131, 2
  %v671 = vpop.permute.xlu0 %670
  %v672 = vsel %vm221, %v669, %v671
  %v673 = vsel %vm221, %v667, %v669
  %v674 = vsel %vm221, %v665, %v667
  %v675 = vsel %vm221, %v671, %v665
  %v676 = vadd.f32 %v675, %v270
  %v677 = vadd.f32 %v674, %v271
  %v678 = vadd.f32 %v673, %v272
  %v679 = vadd.f32 %v672, %v273
  %v680 = vmax.f32 %v660, %v676
  %v681 = vmax.f32 %v661, %v677
  %v682 = vmax.f32 %v662, %v678
  %v683 = vmax.f32 %v663, %v679
  %684 = vrot.lane.b32.xlu0 %v128, 127
  %v685 = vpop.permute.xlu0 %684
  %686 = vrot.lane.b32.xlu0 %v129, 127
  %v687 = vpop.permute.xlu0 %686
  %688 = vrot.lane.b32.xlu0 %v130, 127
  %v689 = vpop.permute.xlu0 %688
  %690 = vrot.lane.b32.xlu0 %v131, 127
  %v691 = vpop.permute.xlu0 %690
  %v692 = vsel %vm282, %v689, %v691
  %v693 = vsel %vm282, %v687, %v689
  %v694 = vsel %vm282, %v685, %v687
  %v695 = vsel %vm282, %v691, %v685
  %v696 = vadd.f32 %v694, %v331
  %v697 = vadd.f32 %v693, %v332
  %v698 = vadd.f32 %v692, %v333
  %v699 = vadd.f32 %v695, %v334
  %v700 = vmax.f32 %v680, %v696
  %v701 = vmax.f32 %v681, %v697
  %v702 = vmax.f32 %v682, %v698
  %v703 = vmax.f32 %v683, %v699
  %704 = vrot.lane.b32.xlu0 %v128, 126
  %v705 = vpop.permute.xlu0 %704
  %706 = vrot.lane.b32.xlu0 %v129, 126
  %v707 = vpop.permute.xlu0 %706
  %708 = vrot.lane.b32.xlu0 %v130, 126
  %v709 = vpop.permute.xlu0 %708
  %710 = vrot.lane.b32.xlu0 %v131, 126
  %v711 = vpop.permute.xlu0 %710
  %v712 = vsel %vm343, %v709, %v711
  %v713 = vsel %vm343, %v707, %v709
  %v714 = vsel %vm343, %v705, %v707
  %v715 = vsel %vm343, %v711, %v705
  %v716 = vadd.f32 %v714, %v392
  %v717 = vadd.f32 %v713, %v393
  %v718 = vadd.f32 %v712, %v394
  %v719 = vadd.f32 %v715, %v395
  %v720 = vmax.f32 %v700, %v716
  %v721 = vmax.f32 %v701, %v717
  %v722 = vmax.f32 %v702, %v718
  %v723 = vmax.f32 %v703, %v719
  %724 = vrot.lane.b32.xlu0 %v720, 16
  %v725 = vpop.permute.xlu0 %724
  %726 = vrot.lane.b32.xlu0 %v721, 16
  %v727 = vpop.permute.xlu0 %726
  %728 = vrot.lane.b32.xlu0 %v722, 16
  %v729 = vpop.permute.xlu0 %728
  %730 = vrot.lane.b32.xlu0 %v723, 16
  %v731 = vpop.permute.xlu0 %730
  %v732 = vsel %vm404, %v729, %v731
  %v733 = vsel %vm404, %v727, %v729
  %v734 = vsel %vm404, %v725, %v727
  %v735 = vsel %vm404, %v731, %v725
  %v736 = vadd.f32 %v735, %v453
  %v737 = vadd.f32 %v734, %v454
  %v738 = vadd.f32 %v733, %v455
  %v739 = vadd.f32 %v732, %v456
  %v740 = vmax.f32 %v720, %v736
  %v741 = vmax.f32 %v721, %v737
  %v742 = vmax.f32 %v722, %v738
  %v743 = vmax.f32 %v723, %v739
  %744 = vrot.lane.b32.xlu0 %v720, 32
  %v745 = vpop.permute.xlu0 %744
  %746 = vrot.lane.b32.xlu0 %v721, 32
  %v747 = vpop.permute.xlu0 %746
  %748 = vrot.lane.b32.xlu0 %v722, 32
  %v749 = vpop.permute.xlu0 %748
  %750 = vrot.lane.b32.xlu0 %v723, 32
  %v751 = vpop.permute.xlu0 %750
  %v752 = vsel %vm465, %v749, %v751
  %v753 = vsel %vm465, %v747, %v749
  %v754 = vsel %vm465, %v745, %v747
  %v755 = vsel %vm465, %v751, %v745
  %v756 = vadd.f32 %v755, %v514
  %v757 = vadd.f32 %v754, %v515
  %v758 = vadd.f32 %v753, %v516
  %v759 = vadd.f32 %v752, %v517
  %v760 = vmax.f32 %v740, %v756
  %v761 = vmax.f32 %v741, %v757
  %v762 = vmax.f32 %v742, %v758
  %v763 = vmax.f32 %v743, %v759
  %764 = vrot.lane.b32.xlu0 %v720, 112
  %v765 = vpop.permute.xlu0 %764
  %766 = vrot.lane.b32.xlu0 %v721, 112
  %v767 = vpop.permute.xlu0 %766
  %768 = vrot.lane.b32.xlu0 %v722, 112
  %v769 = vpop.permute.xlu0 %768
  %770 = vrot.lane.b32.xlu0 %v723, 112
  %v771 = vpop.permute.xlu0 %770
  %v772 = vsel %vm526, %v769, %v771
  %v773 = vsel %vm526, %v767, %v769
  %v774 = vsel %vm526, %v765, %v767
  %v775 = vsel %vm526, %v771, %v765
  %v776 = vadd.f32 %v774, %v575
  %v777 = vadd.f32 %v773, %v576
  %v778 = vadd.f32 %v772, %v577
  %v779 = vadd.f32 %v775, %v578
  %v780 = vmax.f32 %v760, %v776
  %v781 = vmax.f32 %v761, %v777
  %v782 = vmax.f32 %v762, %v778
  %v783 = vmax.f32 %v763, %v779
  %784 = vrot.lane.b32.xlu0 %v720, 96
  %v785 = vpop.permute.xlu0 %784
  %786 = vrot.lane.b32.xlu0 %v721, 96
  %v787 = vpop.permute.xlu0 %786
  %788 = vrot.lane.b32.xlu0 %v722, 96
  %v789 = vpop.permute.xlu0 %788
  %790 = vrot.lane.b32.xlu0 %v723, 96
  %v791 = vpop.permute.xlu0 %790
  %v792 = vsel %vm587, %v789, %v791
  %v793 = vsel %vm587, %v787, %v789
  %v794 = vsel %vm587, %v785, %v787
  %v795 = vsel %vm587, %v791, %v785
  %v796 = vadd.f32 %v794, %v636
  %v797 = vadd.f32 %v793, %v637
  %v798 = vadd.f32 %v792, %v638
  %v799 = vadd.f32 %v795, %v639
  %v800 = vmax.f32 %v780, %v796
  %v801 = vmax.f32 %v781, %v797
  %v802 = vmax.f32 %v782, %v798
  %v803 = vmax.f32 %v783, %v799
  %v808 = vrot.slane %v800, 6
  %v809 = vrot.slane %v801, 6
  %v810 = vrot.slane %v802, 6
  %v811 = vrot.slane %v803, 6
  %816 = vst [vmem:[#allocation2] sm:$0xc] %v808
  %817 = vst [vmem:[#allocation2 + $0x8] sm:$0xc] %v809
  %818 = vst [vmem:[#allocation2 + $0x10] sm:$0xc] %v810
  %819 = vst [vmem:[#allocation2 + $0x18] sm:$0xc] %v811
  %820 = vrot.lane.b32.xlu0 %v800, 1
  %v821 = vpop.permute.xlu0 %820
  %822 = vrot.lane.b32.xlu0 %v801, 1
  %v823 = vpop.permute.xlu0 %822
  %824 = vrot.lane.b32.xlu0 %v802, 1
  %v825 = vpop.permute.xlu0 %824
  %826 = vrot.lane.b32.xlu0 %v803, 1
  %v827 = vpop.permute.xlu0 %826
  %v828 = vsel %vm151, %v825, %v827
  %v829 = vsel %vm151, %v823, %v825
  %v830 = vsel %vm151, %v821, %v823
  %v831 = vsel %vm151, %v827, %v821
  %v832 = vadd.f32 %v831, %v209
  %v833 = vadd.f32 %v830, %v210
  %v834 = vadd.f32 %v829, %v211
  %v835 = vadd.f32 %v828, %v212
  %v836 = vmax.f32 %v800, %v832
  %v837 = vmax.f32 %v801, %v833
  %v838 = vmax.f32 %v802, %v834
  %v839 = vmax.f32 %v803, %v835
  %840 = vrot.lane.b32.xlu0 %v800, 2
  %v841 = vpop.permute.xlu0 %840
  %842 = vrot.lane.b32.xlu0 %v801, 2
  %v843 = vpop.permute.xlu0 %842
  %844 = vrot.lane.b32.xlu0 %v802, 2
  %v845 = vpop.permute.xlu0 %844
  %846 = vrot.lane.b32.xlu0 %v803, 2
  %v847 = vpop.permute.xlu0 %846
  %v848 = vsel %vm221, %v845, %v847
  %v849 = vsel %vm221, %v843, %v845
  %v850 = vsel %vm221, %v841, %v843
  %v851 = vsel %vm221, %v847, %v841
  %v852 = vadd.f32 %v851, %v270
  %v853 = vadd.f32 %v850, %v271
  %v854 = vadd.f32 %v849, %v272
  %v855 = vadd.f32 %v848, %v273
  %v856 = vmax.f32 %v836, %v852
  %v857 = vmax.f32 %v837, %v853
  %v858 = vmax.f32 %v838, %v854
  %v859 = vmax.f32 %v839, %v855
  %860 = vrot.lane.b32.xlu0 %v800, 127
  %v861 = vpop.permute.xlu0 %860
  %862 = vrot.lane.b32.xlu0 %v801, 127
  %v863 = vpop.permute.xlu0 %862
  %864 = vrot.lane.b32.xlu0 %v802, 127
  %v865 = vpop.permute.xlu0 %864
  %866 = vrot.lane.b32.xlu0 %v803, 127
  %v867 = vpop.permute.xlu0 %866
  %v868 = vsel %vm282, %v865, %v867
  %v869 = vsel %vm282, %v863, %v865
  %v870 = vsel %vm282, %v861, %v863
  %v871 = vsel %vm282, %v867, %v861
  %v872 = vadd.f32 %v870, %v331
  %v873 = vadd.f32 %v869, %v332
  %v874 = vadd.f32 %v868, %v333
  %v875 = vadd.f32 %v871, %v334
  %v876 = vmax.f32 %v856, %v872
  %v877 = vmax.f32 %v857, %v873
  %v878 = vmax.f32 %v858, %v874
  %v879 = vmax.f32 %v859, %v875
  %880 = vrot.lane.b32.xlu0 %v800, 126
  %v881 = vpop.permute.xlu0 %880
  %882 = vrot.lane.b32.xlu0 %v801, 126
  %v883 = vpop.permute.xlu0 %882
  %884 = vrot.lane.b32.xlu0 %v802, 126
  %v885 = vpop.permute.xlu0 %884
  %886 = vrot.lane.b32.xlu0 %v803, 126
  %v887 = vpop.permute.xlu0 %886
  %v888 = vsel %vm343, %v885, %v887
  %v889 = vsel %vm343, %v883, %v885
  %v890 = vsel %vm343, %v881, %v883
  %v891 = vsel %vm343, %v887, %v881
  %v892 = vadd.f32 %v890, %v392
  %v893 = vadd.f32 %v889, %v393
  %v894 = vadd.f32 %v888, %v394
  %v895 = vadd.f32 %v891, %v395
  %v896 = vmax.f32 %v876, %v892
  %v897 = vmax.f32 %v877, %v893
  %v898 = vmax.f32 %v878, %v894
  %v899 = vmax.f32 %v879, %v895
  %900 = vrot.lane.b32.xlu0 %v896, 16
  %v901 = vpop.permute.xlu0 %900
  %902 = vrot.lane.b32.xlu0 %v897, 16
  %v903 = vpop.permute.xlu0 %902
  %904 = vrot.lane.b32.xlu0 %v898, 16
  %v905 = vpop.permute.xlu0 %904
  %906 = vrot.lane.b32.xlu0 %v899, 16
  %v907 = vpop.permute.xlu0 %906
  %v908 = vsel %vm404, %v905, %v907
  %v909 = vsel %vm404, %v903, %v905
  %v910 = vsel %vm404, %v901, %v903
  %v911 = vsel %vm404, %v907, %v901
  %v912 = vadd.f32 %v911, %v453
  %v913 = vadd.f32 %v910, %v454
  %v914 = vadd.f32 %v909, %v455
  %v915 = vadd.f32 %v908, %v456
  %v916 = vmax.f32 %v896, %v912
  %v917 = vmax.f32 %v897, %v913
  %v918 = vmax.f32 %v898, %v914
  %v919 = vmax.f32 %v899, %v915
  %920 = vrot.lane.b32.xlu0 %v896, 32
  %v921 = vpop.permute.xlu0 %920
  %922 = vrot.lane.b32.xlu0 %v897, 32
  %v923 = vpop.permute.xlu0 %922
  %924 = vrot.lane.b32.xlu0 %v898, 32
  %v925 = vpop.permute.xlu0 %924
  %926 = vrot.lane.b32.xlu0 %v899, 32
  %v927 = vpop.permute.xlu0 %926
  %v928 = vsel %vm465, %v925, %v927
  %v929 = vsel %vm465, %v923, %v925
  %v930 = vsel %vm465, %v921, %v923
  %v931 = vsel %vm465, %v927, %v921
  %v932 = vadd.f32 %v931, %v514
  %v933 = vadd.f32 %v930, %v515
  %v934 = vadd.f32 %v929, %v516
  %v935 = vadd.f32 %v928, %v517
  %v936 = vmax.f32 %v916, %v932
  %v937 = vmax.f32 %v917, %v933
  %v938 = vmax.f32 %v918, %v934
  %v939 = vmax.f32 %v919, %v935
  %940 = vrot.lane.b32.xlu0 %v896, 112
  %v941 = vpop.permute.xlu0 %940
  %942 = vrot.lane.b32.xlu0 %v897, 112
  %v943 = vpop.permute.xlu0 %942
  %944 = vrot.lane.b32.xlu0 %v898, 112
  %v945 = vpop.permute.xlu0 %944
  %946 = vrot.lane.b32.xlu0 %v899, 112
  %v947 = vpop.permute.xlu0 %946
  %v948 = vsel %vm526, %v945, %v947
  %v949 = vsel %vm526, %v943, %v945
  %v950 = vsel %vm526, %v941, %v943
  %v951 = vsel %vm526, %v947, %v941
  %v952 = vadd.f32 %v950, %v575
  %v953 = vadd.f32 %v949, %v576
  %v954 = vadd.f32 %v948, %v577
  %v955 = vadd.f32 %v951, %v578
  %v956 = vmax.f32 %v936, %v952
  %v957 = vmax.f32 %v937, %v953
  %v958 = vmax.f32 %v938, %v954
  %v959 = vmax.f32 %v939, %v955
  %960 = vrot.lane.b32.xlu0 %v896, 96
  %v961 = vpop.permute.xlu0 %960
  %962 = vrot.lane.b32.xlu0 %v897, 96
  %v963 = vpop.permute.xlu0 %962
  %964 = vrot.lane.b32.xlu0 %v898, 96
  %v965 = vpop.permute.xlu0 %964
  %966 = vrot.lane.b32.xlu0 %v899, 96
  %v967 = vpop.permute.xlu0 %966
  %v968 = vsel %vm587, %v965, %v967
  %v969 = vsel %vm587, %v963, %v965
  %v970 = vsel %vm587, %v961, %v963
  %v971 = vsel %vm587, %v967, %v961
  %v972 = vadd.f32 %v970, %v636
  %v973 = vadd.f32 %v969, %v637
  %v974 = vadd.f32 %v968, %v638
  %v975 = vadd.f32 %v971, %v639
  %v976 = vmax.f32 %v956, %v972
  %v977 = vmax.f32 %v957, %v973
  %v978 = vmax.f32 %v958, %v974
  %v979 = vmax.f32 %v959, %v975
  %v984 = vrot.slane %v976, 4
  %v985 = vrot.slane %v977, 4
  %v986 = vrot.slane %v978, 4
  %v987 = vrot.slane %v979, 4
  %992 = vst [vmem:[#allocation2] sm:$0x30] %v984
  %993 = vst [vmem:[#allocation2 + $0x8] sm:$0x30] %v985
  %994 = vst [vmem:[#allocation2 + $0x10] sm:$0x30] %v986
  %995 = vst [vmem:[#allocation2 + $0x18] sm:$0x30] %v987
  %996 = vrot.lane.b32.xlu0 %v976, 1
  %v997 = vpop.permute.xlu0 %996
  %998 = vrot.lane.b32.xlu0 %v977, 1
  %v999 = vpop.permute.xlu0 %998
  %1000 = vrot.lane.b32.xlu0 %v978, 1
  %v1001 = vpop.permute.xlu0 %1000
  %1002 = vrot.lane.b32.xlu0 %v979, 1
  %v1003 = vpop.permute.xlu0 %1002
  %v1004 = vsel %vm151, %v1001, %v1003
  %v1005 = vsel %vm151, %v999, %v1001
  %v1006 = vsel %vm151, %v997, %v999
  %v1007 = vsel %vm151, %v1003, %v997
  %v1008 = vadd.f32 %v1007, %v209
  %v1009 = vadd.f32 %v1006, %v210
  %v1010 = vadd.f32 %v1005, %v211
  %v1011 = vadd.f32 %v1004, %v212
  %v1012 = vmax.f32 %v976, %v1008
  %v1013 = vmax.f32 %v977, %v1009
  %v1014 = vmax.f32 %v978, %v1010
  %v1015 = vmax.f32 %v979, %v1011
  %1016 = vrot.lane.b32.xlu0 %v976, 2
  %v1017 = vpop.permute.xlu0 %1016
  %1018 = vrot.lane.b32.xlu0 %v977, 2
  %v1019 = vpop.permute.xlu0 %1018
  %1020 = vrot.lane.b32.xlu0 %v978, 2
  %v1021 = vpop.permute.xlu0 %1020
  %1022 = vrot.lane.b32.xlu0 %v979, 2
  %v1023 = vpop.permute.xlu0 %1022
  %v1024 = vsel %vm221, %v1021, %v1023
  %v1025 = vsel %vm221, %v1019, %v1021
  %v1026 = vsel %vm221, %v1017, %v1019
  %v1027 = vsel %vm221, %v1023, %v1017
  %v1028 = vadd.f32 %v1027, %v270
  %v1029 = vadd.f32 %v1026, %v271
  %v1030 = vadd.f32 %v1025, %v272
  %v1031 = vadd.f32 %v1024, %v273
  %v1032 = vmax.f32 %v1012, %v1028
  %v1033 = vmax.f32 %v1013, %v1029
  %v1034 = vmax.f32 %v1014, %v1030
  %v1035 = vmax.f32 %v1015, %v1031
  %1036 = vrot.lane.b32.xlu0 %v976, 127
  %v1037 = vpop.permute.xlu0 %1036
  %1038 = vrot.lane.b32.xlu0 %v977, 127
  %v1039 = vpop.permute.xlu0 %1038
  %1040 = vrot.lane.b32.xlu0 %v978, 127
  %v1041 = vpop.permute.xlu0 %1040
  %1042 = vrot.lane.b32.xlu0 %v979, 127
  %v1043 = vpop.permute.xlu0 %1042
  %v1044 = vsel %vm282, %v1041, %v1043
  %v1045 = vsel %vm282, %v1039, %v1041
  %v1046 = vsel %vm282, %v1037, %v1039
  %v1047 = vsel %vm282, %v1043, %v1037
  %v1048 = vadd.f32 %v1046, %v331
  %v1049 = vadd.f32 %v1045, %v332
  %v1050 = vadd.f32 %v1044, %v333
  %v1051 = vadd.f32 %v1047, %v334
  %v1052 = vmax.f32 %v1032, %v1048
  %v1053 = vmax.f32 %v1033, %v1049
  %v1054 = vmax.f32 %v1034, %v1050
  %v1055 = vmax.f32 %v1035, %v1051
  %1056 = vrot.lane.b32.xlu0 %v976, 126
  %v1057 = vpop.permute.xlu0 %1056
  %1058 = vrot.lane.b32.xlu0 %v977, 126
  %v1059 = vpop.permute.xlu0 %1058
  %1060 = vrot.lane.b32.xlu0 %v978, 126
  %v1061 = vpop.permute.xlu0 %1060
  %1062 = vrot.lane.b32.xlu0 %v979, 126
  %v1063 = vpop.permute.xlu0 %1062
  %v1064 = vsel %vm343, %v1061, %v1063
  %v1065 = vsel %vm343, %v1059, %v1061
  %v1066 = vsel %vm343, %v1057, %v1059
  %v1067 = vsel %vm343, %v1063, %v1057
  %v1068 = vadd.f32 %v1066, %v392
  %v1069 = vadd.f32 %v1065, %v393
  %v1070 = vadd.f32 %v1064, %v394
  %v1071 = vadd.f32 %v1067, %v395
  %v1072 = vmax.f32 %v1052, %v1068
  %v1073 = vmax.f32 %v1053, %v1069
  %v1074 = vmax.f32 %v1054, %v1070
  %v1075 = vmax.f32 %v1055, %v1071
  %1076 = vrot.lane.b32.xlu0 %v1072, 16
  %v1077 = vpop.permute.xlu0 %1076
  %1078 = vrot.lane.b32.xlu0 %v1073, 16
  %v1079 = vpop.permute.xlu0 %1078
  %1080 = vrot.lane.b32.xlu0 %v1074, 16
  %v1081 = vpop.permute.xlu0 %1080
  %1082 = vrot.lane.b32.xlu0 %v1075, 16
  %v1083 = vpop.permute.xlu0 %1082
  %v1084 = vsel %vm404, %v1081, %v1083
  %v1085 = vsel %vm404, %v1079, %v1081
  %v1086 = vsel %vm404, %v1077, %v1079
  %v1087 = vsel %vm404, %v1083, %v1077
  %v1088 = vadd.f32 %v1087, %v453
  %v1089 = vadd.f32 %v1086, %v454
  %v1090 = vadd.f32 %v1085, %v455
  %v1091 = vadd.f32 %v1084, %v456
  %v1092 = vmax.f32 %v1072, %v1088
  %v1093 = vmax.f32 %v1073, %v1089
  %v1094 = vmax.f32 %v1074, %v1090
  %v1095 = vmax.f32 %v1075, %v1091
  %1096 = vrot.lane.b32.xlu0 %v1072, 32
  %v1097 = vpop.permute.xlu0 %1096
  %1098 = vrot.lane.b32.xlu0 %v1073, 32
  %v1099 = vpop.permute.xlu0 %1098
  %1100 = vrot.lane.b32.xlu0 %v1074, 32
  %v1101 = vpop.permute.xlu0 %1100
  %1102 = vrot.lane.b32.xlu0 %v1075, 32
  %v1103 = vpop.permute.xlu0 %1102
  %v1104 = vsel %vm465, %v1101, %v1103
  %v1105 = vsel %vm465, %v1099, %v1101
  %v1106 = vsel %vm465, %v1097, %v1099
  %v1107 = vsel %vm465, %v1103, %v1097
  %v1108 = vadd.f32 %v1107, %v514
  %v1109 = vadd.f32 %v1106, %v515
  %v1110 = vadd.f32 %v1105, %v516
  %v1111 = vadd.f32 %v1104, %v517
  %v1112 = vmax.f32 %v1092, %v1108
  %v1113 = vmax.f32 %v1093, %v1109
  %v1114 = vmax.f32 %v1094, %v1110
  %v1115 = vmax.f32 %v1095, %v1111
  %1116 = vrot.lane.b32.xlu0 %v1072, 112
  %v1117 = vpop.permute.xlu0 %1116
  %1118 = vrot.lane.b32.xlu0 %v1073, 112
  %v1119 = vpop.permute.xlu0 %1118
  %1120 = vrot.lane.b32.xlu0 %v1074, 112
  %v1121 = vpop.permute.xlu0 %1120
  %1122 = vrot.lane.b32.xlu0 %v1075, 112
  %v1123 = vpop.permute.xlu0 %1122
  %v1124 = vsel %vm526, %v1121, %v1123
  %v1125 = vsel %vm526, %v1119, %v1121
  %v1126 = vsel %vm526, %v1117, %v1119
  %v1127 = vsel %vm526, %v1123, %v1117
  %v1128 = vadd.f32 %v1126, %v575
  %v1129 = vadd.f32 %v1125, %v576
  %v1130 = vadd.f32 %v1124, %v577
  %v1131 = vadd.f32 %v1127, %v578
  %v1132 = vmax.f32 %v1112, %v1128
  %v1133 = vmax.f32 %v1113, %v1129
  %v1134 = vmax.f32 %v1114, %v1130
  %v1135 = vmax.f32 %v1115, %v1131
  %1136 = vrot.lane.b32.xlu0 %v1072, 96
  %v1137 = vpop.permute.xlu0 %1136
  %1138 = vrot.lane.b32.xlu0 %v1073, 96
  %v1139 = vpop.permute.xlu0 %1138
  %1140 = vrot.lane.b32.xlu0 %v1074, 96
  %v1141 = vpop.permute.xlu0 %1140
  %1142 = vrot.lane.b32.xlu0 %v1075, 96
  %v1143 = vpop.permute.xlu0 %1142
  %v1144 = vsel %vm587, %v1141, %v1143
  %v1145 = vsel %vm587, %v1139, %v1141
  %v1146 = vsel %vm587, %v1137, %v1139
  %v1147 = vsel %vm587, %v1143, %v1137
  %v1148 = vadd.f32 %v1146, %v636
  %v1149 = vadd.f32 %v1145, %v637
  %v1150 = vadd.f32 %v1144, %v638
  %v1151 = vadd.f32 %v1147, %v639
  %v1152 = vmax.f32 %v1132, %v1148
  %v1153 = vmax.f32 %v1133, %v1149
  %v1154 = vmax.f32 %v1134, %v1150
  %v1155 = vmax.f32 %v1135, %v1151
  %v1160 = vrot.slane %v1152, 2
  %v1161 = vrot.slane %v1153, 2
  %v1162 = vrot.slane %v1154, 2
  %v1163 = vrot.slane %v1155, 2
  %1168 = vst [vmem:[#allocation2] sm:$0xc0] %v1160
  %1169 = vst [vmem:[#allocation2 + $0x8] sm:$0xc0] %v1161
  %1170 = vst [vmem:[#allocation2 + $0x10] sm:$0xc0] %v1162
  %1171 = vst [vmem:[#allocation2 + $0x18] sm:$0xc0] %v1163
  %v1172 = vld [vmem:[%s5] sm:$0xf]
  %v1173 = vld [vmem:[#allocation2] sm:$0xff]
  %v1174 = vld [vmem:[#allocation2 + $0x8] sm:$0xff]
  %v1175 = vld [vmem:[#allocation2 + $0x10] sm:$0xff]
  %v1176 = vld [vmem:[#allocation2 + $0x18] sm:$0xff]
  %v1177 = vpack.c.bf16 %v1173, %v1173
  %v1178 = vpack.c.bf16 %v1174, %v1174
  %v1179 = vpack.c.bf16 %v1175, %v1175
  %v1180 = vpack.c.bf16 %v1176, %v1176
  %v1181 = vld [vmem:[%s6] sm:$0xff]
  %1183 = vset.pattern.permute.xlu0 0
  %1184 = vperm.xlu0 %1183, %v1181
  %v1185 = vpop.permute.xlu0 %1184
  %vm1187 = vcmask 64512
  %v1189 = vsel %vm1187, %v1172, 0
  %vm1191 = vcmask 1043456
  %v1193 = vsel %vm1191, %v1177, 0
  %v1196 = vsel %vm1191, %v1178, 0
  %v1199 = vsel %vm1191, %v1179, 0
  %v1202 = vsel %vm1191, %v1180, 0
  %1204 = vmatpush.bf16.msra.mxu0 0
  %1205 = vmatpush.bf16.msra.mxu0 0
  %1206 = vmatpush.bf16.msra.mxu0 0
  %1207 = vmatpush.bf16.msra.mxu0 0
  %1208 = vmatpush.bf16.msra.mxu0 0
  %1209 = vmatpush.bf16.msra.mxu0 0
  %1210 = vmatpush.bf16.msra.mxu0 0
  %1211 = vmatpush.bf16.msra.mxu0 %v1193
  %1212 = vmatmul.bf16.gmra.mxu0 %v1189
  %v1213 = vpop.f32.mrf.mxu0
  %v1214 = vadd.f32 %v1185, %v1213
  %v1215 = vpop.f32.mrf.mxu0
  %1216 = vdwg.mxu0
  %1217 = vmatpush.bf16.msra.mxu0 0
  %1218 = vmatpush.bf16.msra.mxu0 0
  %1219 = vmatpush.bf16.msra.mxu0 0
  %1220 = vmatpush.bf16.msra.mxu0 0
  %1221 = vmatpush.bf16.msra.mxu0 0
  %1222 = vmatpush.bf16.msra.mxu0 0
  %1223 = vmatpush.bf16.msra.mxu0 0
  %1224 = vmatpush.bf16.msra.mxu0 %v1196
  %1225 = vmatmul.bf16.gmra.mxu0 %v1189
  %v1226 = vpop.f32.mrf.mxu0
  %v1227 = vadd.f32 %v1185, %v1226
  %v1228 = vpop.f32.mrf.mxu0
  %1229 = vdwg.mxu0
  %1230 = vmatpush.bf16.msra.mxu0 0
  %1231 = vmatpush.bf16.msra.mxu0 0
  %1232 = vmatpush.bf16.msra.mxu0 0
  %1233 = vmatpush.bf16.msra.mxu0 0
  %1234 = vmatpush.bf16.msra.mxu0 0
  %1235 = vmatpush.bf16.msra.mxu0 0
  %1236 = vmatpush.bf16.msra.mxu0 0
  %1237 = vmatpush.bf16.msra.mxu0 %v1199
  %1238 = vmatmul.bf16.gmra.mxu0 %v1189
  %v1239 = vpop.f32.mrf.mxu0
  %v1240 = vadd.f32 %v1185, %v1239
  %v1241 = vpop.f32.mrf.mxu0
  %1242 = vdwg.mxu0
  %1243 = vmatpush.bf16.msra.mxu0 0
  %1244 = vmatpush.bf16.msra.mxu0 0
  %1245 = vmatpush.bf16.msra.mxu0 0
  %1246 = vmatpush.bf16.msra.mxu0 0
  %1247 = vmatpush.bf16.msra.mxu0 0
  %1248 = vmatpush.bf16.msra.mxu0 0
  %1249 = vmatpush.bf16.msra.mxu0 0
  %1250 = vmatpush.bf16.msra.mxu0 %v1202
  %1251 = vmatmul.bf16.gmra.mxu0 %v1189
  %v1252 = vpop.f32.mrf.mxu0
  %v1253 = vadd.f32 %v1185, %v1252
  %v1254 = vpop.f32.mrf.mxu0
  %1255 = vdwg.mxu0
  %v1256 = vsub.f32 0.0, %v1214
  %v1257 = vsub.f32 0.0, %v1227
  %v1258 = vsub.f32 0.0, %v1240
  %v1259 = vsub.f32 0.0, %v1253
  %v1260 = vmul.f32 %v1256, 1.442695
  %v1261 = vpow.pop %v1260
  %v1262 = vmul.f32 %v1257, 1.442695
  %v1263 = vpow.pop %v1262
  %v1264 = vmul.f32 %v1258, 1.442695
  %v1265 = vpow.pop %v1264
  %v1266 = vmul.f32 %v1259, 1.442695
  %v1267 = vpow.pop %v1266
  %v1268 = vadd.f32 %v1261, 1.0
  %v1269 = vadd.f32 %v1263, 1.0
  %v1270 = vadd.f32 %v1265, 1.0
  %v1271 = vadd.f32 %v1267, 1.0
  %v1272 = vrcp.pop %v1268
  %v1273 = vrcp.pop %v1269
  %v1274 = vrcp.pop %v1270
  %v1275 = vrcp.pop %v1271
  %v1276 = vmul.f32 %v1214, %v1272
  %v1277 = vmul.f32 %v1227, %v1273
  %v1278 = vmul.f32 %v1240, %v1274
  %v1279 = vmul.f32 %v1253, %v1275
  %1280 = vst [vmem:[%s7] sm:$0xff] %v1276
  %1281 = vst [vmem:[%s7 + $0x8] sm:$0xff] %v1277
  %1282 = vst [vmem:[%s7 + $0x10] sm:$0xff] %v1278
  %1283 = vst [vmem:[%s7 + $0x18] sm:$0xff] %v1279
  // Predicated region
  $region30: #{sppf_forward.1} parent=0 // pred_check
    _
  $region31: #{sppf_forward.1} parent=0 // pred_check_branch
    %1285 = sbr.rel (0) target = $region33
  $region32: #{sppf_forward.1} parent=0 // pred_region
    _
  $region33: #{sppf_forward.1} parent=0 // pred_fallthru
    _
  // Predicated region
  $region34: #{sppf_forward.1} parent=0 // pred_check
    _
  $region35: #{sppf_forward.1} parent=0 // pred_check_branch
    %1287 = sbr.rel (0) target = $region37
  $region36: #{sppf_forward.1} parent=0 // pred_region
    _
  $region37: #{sppf_forward.1} parent=0 // pred_fallthru
    _

</llo_original>
